<compile_context>
chip_gen: v7x
topology: tpu7x:2x2x1
jax: 0.10.0
libtpu: 0.0.40
codegen_flags: <defaults>
</compile_context>

<pallas_src>
import math

import jax
import jax.numpy as jnp
from jax.experimental import pallas as pl
from jax.experimental.pallas import tpu as pltpu


_VMEM = pl.BlockSpec(memory_space=pltpu.MemorySpace.VMEM)


# ----------------------------------------------------------------------------
# Kernel 1: hoisted input projection (one big MXU matmul, both directions).
#   x:(S*B, D)  w:(D, 6H)  b:(1, 6H)  ->  gi:(S*B, 6H)
# ----------------------------------------------------------------------------
def _inproj_kernel(x_ref, w_ref, b_ref, o_ref):
    o_ref[...] = (jnp.dot(x_ref[...], w_ref[...],
                          preferred_element_type=jnp.float32)
                  + b_ref[...]).astype(o_ref.dtype)


# ----------------------------------------------------------------------------
# Kernel 2: fused bidirectional GRU recurrence, single invocation.
#   gi:(S, B, 6H)  whh:(H, 6H)  bhh:(1, 6H)
#   out:(S, B, 2H)  hn:(2, B, H)
# Hidden state for both directions is packed as h_scr:(2B, H)
# (rows [0:B] = forward, rows [B:2B] = backward).
# ----------------------------------------------------------------------------
def _bigru_rnn_kernel(gi_ref, whh_ref, bhh_ref, out_ref, hn_ref,
                      h_scr, outf_scr, outb_scr):
    S, B, _ = gi_ref.shape
    H = whh_ref.shape[0]
    G = 3 * H

    h_scr[...] = jnp.zeros_like(h_scr)       # PyTorch default h0 = 0
    whh = whh_ref[...]                       # (H, 6H), resident across the loop
    bhh = bhh_ref[...]                       # (1, 6H)

    def step(t, carry):
        tb = S - 1 - t
        h = h_scr[...]                                              # (2B, H)
        # One recurrent MXU matmul covering both directions; keep the forward
        # rows of the first 3H columns and the backward rows of the last 3H.
        gh_all = jnp.dot(h, whh, preferred_element_type=jnp.float32) + bhh
        gh = jnp.concatenate(
            [gh_all[0:B, 0:G], gh_all[B:2 * B, G:2 * G]], axis=0)   # (2B, 3H)
        gi = jnp.concatenate(
            [gi_ref[t][:, 0:G], gi_ref[tb][:, G:2 * G]], axis=0)    # (2B, 3H)

        # PyTorch GRU gate order [r, z, n]; gate math packed over 2B rows.
        r = jax.nn.sigmoid(gi[:, 0:H] + gh[:, 0:H])
        z = jax.nn.sigmoid(gi[:, H:2 * H] + gh[:, H:2 * H])
        n = jnp.tanh(gi[:, 2 * H:3 * H] + r * gh[:, 2 * H:3 * H])
        h_new = (1.0 - z) * n + z * h

        h_scr[...] = h_new
        outf_scr[t] = h_new[0:B]             # forward output at time t
        outb_scr[tb] = h_new[B:2 * B]        # backward output at time S-1-t
        return carry

    jax.lax.fori_loop(0, S, step, 0, unroll=True)

    # Single lane-dense (S, B, 2H) store for the layer output.
    out_ref[...] = jnp.concatenate([outf_scr[...], outb_scr[...]], axis=-1)
    h_last = h_scr[...]
    hn_ref[0] = h_last[0:B]
    hn_ref[1] = h_last[B:2 * B]


# ----------------------------------------------------------------------------
# One bidirectional GRU layer (two pallas_calls: projection + recurrence)
# ----------------------------------------------------------------------------
def bigru_layer(x_tmajor, p_fwd, p_bwd):
    """x_tmajor: (S, B, D) f32. Returns (out (S, B, 2H), h_n (2, B, H))."""
    S, B, D = x_tmajor.shape
    H = p_fwd["w_hh"].shape[1]
    G = 3 * H

    # Pack both directions: columns [0:3H] forward, [3H:6H] backward.
    wih = jnp.concatenate([p_fwd["w_ih"].T, p_bwd["w_ih"].T], axis=1)   # (D, 6H)
    bih = jnp.concatenate([p_fwd["b_ih"], p_bwd["b_ih"]]).reshape(1, 2 * G)
    whh = jnp.concatenate([p_fwd["w_hh"].T, p_bwd["w_hh"].T], axis=1)   # (H, 6H)
    bhh = jnp.concatenate([p_fwd["b_hh"], p_bwd["b_hh"]]).reshape(1, 2 * G)

    # 1) Hoisted input projection: one MXU matmul over all timesteps + dirs.
    gi2d = pl.pallas_call(
        _inproj_kernel,
        out_shape=jax.ShapeDtypeStruct((S * B, 2 * G), jnp.float32),
        in_specs=[_VMEM, _VMEM, _VMEM],
        out_specs=_VMEM,
    )(x_tmajor.reshape(S * B, D), wih, bih)
    gi = gi2d.reshape(S, B, 2 * G)

    # 2) Fused bidirectional recurrence in a single kernel invocation.
    out, hn = pl.pallas_call(
        _bigru_rnn_kernel,
        out_shape=(jax.ShapeDtypeStruct((S, B, 2 * H), jnp.float32),
                   jax.ShapeDtypeStruct((2, B, H), jnp.float32)),
        in_specs=[_VMEM, _VMEM, _VMEM],
        out_specs=(_VMEM, _VMEM),
        scratch_shapes=[pltpu.VMEM((2 * B, H), jnp.float32),   # packed hidden
                        pltpu.VMEM((S, B, H), jnp.float32),    # fwd outputs
                        pltpu.VMEM((S, B, H), jnp.float32)],   # bwd outputs
    )(gi, whh, bhh)
    return out, hn


# ----------------------------------------------------------------------------
# Encoder forward (embedding gather in plain JAX glue, recurrence in Pallas)
# ----------------------------------------------------------------------------
def encoder_forward(params, tokens, n_layers):
    emb = params["embedding"][tokens]                       # (B, S, E) gather
    x = jnp.transpose(emb, (1, 0, 2)).astype(jnp.float32)   # (S, B, E)

    hiddens = []
    for layer in range(n_layers):
        p_fwd = params["gru"][(layer, 0)]
        p_bwd = params["gru"][(layer, 1)]
        x, hn = bigru_layer(x, p_fwd, p_bwd)                # x: (S, B, 2H)
        hiddens.append(hn)

    outputs = jnp.transpose(x, (1, 0, 2))                   # (B, S, 2H)
    hidden = jnp.concatenate(hiddens, axis=0)               # (2*n_layers, B, H)
    return outputs, hidden


# ----------------------------------------------------------------------------
# Pure-JAX reference (lax.scan) for correctness check
# ----------------------------------------------------------------------------
def _ref_gru_dir(x_tmajor, w_ih, w_hh, b_ih, b_hh, reverse):
    H = w_hh.shape[1]
    xs = x_tmajor[::-1] if reverse else x_tmajor
    hi = jax.lax.Precision.HIGHEST

    def step(h, x):
        gi = jnp.dot(x, w_ih.T, preferred_element_type=jnp.float32, precision=hi) + b_ih
        gh = jnp.dot(h, w_hh.T, preferred_element_type=jnp.float32, precision=hi) + b_hh
        r = jax.nn.sigmoid(gi[:, :H] + gh[:, :H])
        z = jax.nn.sigmoid(gi[:, H:2 * H] + gh[:, H:2 * H])
        n = jnp.tanh(gi[:, 2 * H:] + r * gh[:, 2 * H:])
        h_new = (1.0 - z) * n + z * h
        return h_new, h_new

    h0 = jnp.zeros((x_tmajor.shape[1], H), jnp.float32)
    hn, ys = jax.lax.scan(step, h0, xs)
    if reverse:
        ys = ys[::-1]
    return ys, hn


def ref_encoder_forward(params, tokens, n_layers):
    emb = params["embedding"][tokens]
    x = jnp.transpose(emb, (1, 0, 2)).astype(jnp.float32)
    hiddens = []
    for layer in range(n_layers):
        outs = []
        for direction, rev in ((0, False), (1, True)):
            p = params["gru"][(layer, direction)]
            o, hn = _ref_gru_dir(x, p["w_ih"], p["w_hh"], p["b_ih"], p["b_hh"], rev)
            outs.append(o)
            hiddens.append(hn)
        x = jnp.concatenate(outs, axis=-1)
    return jnp.transpose(x, (1, 0, 2)), jnp.stack(hiddens, axis=0)


# ----------------------------------------------------------------------------
# Deterministic parameter init (mirrors nn.GRU uniform(-1/sqrt(H), 1/sqrt(H)))
# ----------------------------------------------------------------------------
def init_params(key, vocab, emb_dim, hid_dim, n_layers):
    k_emb, key = jax.random.split(key)
    params = {"embedding": jax.random.normal(k_emb, (vocab, emb_dim), jnp.float32),
              "gru": {}}
    bound = 1.0 / math.sqrt(hid_dim)
    for layer in range(n_layers):
        in_dim = emb_dim if layer == 0 else 2 * hid_dim
        for direction in range(2):
            ks = jax.random.split(key, 5)
            key = ks[0]
            params["gru"][(layer, direction)] = {
                "w_ih": jax.random.uniform(ks[1], (3 * hid_dim, in_dim),
                                           jnp.float32, -bound, bound),
                "w_hh": jax.random.uniform(ks[2], (3 * hid_dim, hid_dim),
                                           jnp.float32, -bound, bound),
                "b_ih": jax.random.uniform(ks[3], (3 * hid_dim,),
                                           jnp.float32, -bound, bound),
                "b_hh": jax.random.uniform(ks[4], (3 * hid_dim,),
                                           jnp.float32, -bound, bound),
            }
    return params


if __name__ == "__main__":
    en_vocab_size, emb_dim, hid_dim, n_layers = 100, 16, 32, 2
    batch, seq = 2, 8

    key = jax.random.PRNGKey(0)
    k_tok, k_par = jax.random.split(key)
    tokens = jax.random.randint(k_tok, (batch, seq), 0, en_vocab_size, jnp.int32)
    params = init_params(k_par, en_vocab_size, emb_dim, hid_dim, n_layers)

    fwd = jax.jit(encoder_forward, static_argnums=2)
    outputs, hidden = fwd(params, tokens, n_layers)
    outputs, hidden = jax.block_until_ready((outputs, hidden))

    assert outputs.shape == (batch, seq, 2 * hid_dim), outputs.shape
    assert hidden.shape == (2 * n_layers, batch, hid_dim), hidden.shape

    ref_out, ref_hid = ref_encoder_forward(params, tokens, n_layers)
    assert jnp.allclose(outputs, ref_out, atol=1e-3, rtol=1e-3)
    assert jnp.allclose(hidden, ref_hid, atol=1e-3, rtol=1e-3)
    assert bool(jnp.all(jnp.isfinite(outputs))) and bool(jnp.all(jnp.isfinite(hidden)))

    print("KERNEL_OK")
</pallas_src>

<mosaic_0001>
module attributes {stable_mosaic.version = 11 : i64} {
  func.func @_inproj_kernel(%arg0: memref<16x64xf32, #tpu.memory_space<vmem>>, %arg1: memref<64x192xf32, #tpu.memory_space<vmem>>, %arg2: memref<1x192xf32, #tpu.memory_space<vmem>>, %arg3: memref<16x192xf32, #tpu.memory_space<vmem>>) attributes {dimension_semantics = [], scalar_prefetch = 0 : i64, scratch_operands = 0 : i64, tpu.core_type = #tpu.core_type<tc>} {
    %c0 = arith.constant 0 : index
    %c0_0 = arith.constant 0 : index
    %0 = vector.load %arg0[%c0, %c0_0] : memref<16x64xf32, #tpu.memory_space<vmem>>, vector<16x64xf32>
    %c0_1 = arith.constant 0 : index
    %c0_2 = arith.constant 0 : index
    %1 = vector.load %arg1[%c0_1, %c0_2] : memref<64x192xf32, #tpu.memory_space<vmem>>, vector<64x192xf32>
    %cst = arith.constant dense<0.000000e+00> : vector<16x192xf32>
    %2 = tpu.matmul %0, %1, %cst {dimension_numbers = #tpu.dot_dimension_numbers<[1], [0], [0], [1], [0, 0, 1, 1], [], []>} : vector<16x64xf32>, vector<64x192xf32>, vector<16x192xf32> -> vector<16x192xf32>
    %c0_3 = arith.constant 0 : index
    %c0_4 = arith.constant 0 : index
    %3 = vector.load %arg2[%c0_3, %c0_4] : memref<1x192xf32, #tpu.memory_space<vmem>>, vector<1x192xf32>
    %4 = vector.broadcast %3 : vector<1x192xf32> to vector<16x192xf32>
    %5 = arith.addf %2, %4 : vector<16x192xf32>
    %c0_5 = arith.constant 0 : index
    %c0_6 = arith.constant 0 : index
    %6 = vector.load %arg3[%c0_5, %c0_6] : memref<16x192xf32, #tpu.memory_space<vmem>>, vector<16x192xf32>
    tpu.vector_store %arg3[%c0_5, %c0_6], %5 {strides = array<i32>} : memref<16x192xf32, #tpu.memory_space<vmem>>, vector<16x192xf32>,
    return
  }
}

module attributes {stable_mosaic.version = 11 : i64} {
  func.func @_inproj_kernel(%arg0: memref<16x16xf32, #tpu.memory_space<vmem>>, %arg1: memref<16x192xf32, #tpu.memory_space<vmem>>, %arg2: memref<1x192xf32, #tpu.memory_space<vmem>>, %arg3: memref<16x192xf32, #tpu.memory_space<vmem>>) attributes {dimension_semantics = [], scalar_prefetch = 0 : i64, scratch_operands = 0 : i64, tpu.core_type = #tpu.core_type<tc>} {
    %c0 = arith.constant 0 : index
    %c0_0 = arith.constant 0 : index
    %0 = vector.load %arg0[%c0, %c0_0] : memref<16x16xf32, #tpu.memory_space<vmem>>, vector<16x16xf32>
    %c0_1 = arith.constant 0 : index
    %c0_2 = arith.constant 0 : index
    %1 = vector.load %arg1[%c0_1, %c0_2] : memref<16x192xf32, #tpu.memory_space<vmem>>, vector<16x192xf32>
    %cst = arith.constant dense<0.000000e+00> : vector<16x192xf32>
    %2 = tpu.matmul %0, %1, %cst {dimension_numbers = #tpu.dot_dimension_numbers<[1], [0], [0], [1], [0, 0, 1, 1], [], []>} : vector<16x16xf32>, vector<16x192xf32>, vector<16x192xf32> -> vector<16x192xf32>
    %c0_3 = arith.constant 0 : index
    %c0_4 = arith.constant 0 : index
    %3 = vector.load %arg2[%c0_3, %c0_4] : memref<1x192xf32, #tpu.memory_space<vmem>>, vector<1x192xf32>
    %4 = vector.broadcast %3 : vector<1x192xf32> to vector<16x192xf32>
    %5 = arith.addf %2, %4 : vector<16x192xf32>
    %c0_5 = arith.constant 0 : index
    %c0_6 = arith.constant 0 : index
    %6 = vector.load %arg3[%c0_5, %c0_6] : memref<16x192xf32, #tpu.memory_space<vmem>>, vector<16x192xf32>
    tpu.vector_store %arg3[%c0_5, %c0_6], %5 {strides = array<i32>} : memref<16x192xf32, #tpu.memory_space<vmem>>, vector<16x192xf32>,
    return
  }
}

module attributes {stable_mosaic.version = 11 : i64} {
  func.func @_bigru_rnn_kernel(%arg0: memref<8x2x192xf32, #tpu.memory_space<vmem>>, %arg1: memref<32x192xf32, #tpu.memory_space<vmem>>, %arg2: memref<1x192xf32, #tpu.memory_space<vmem>>, %arg3: memref<8x2x64xf32, #tpu.memory_space<vmem>>, %arg4: memref<2x2x32xf32, #tpu.memory_space<vmem>>, %arg5: memref<4x32xf32, #tpu.memory_space<vmem>>, %arg6: memref<8x2x32xf32, #tpu.memory_space<vmem>>, %arg7: memref<8x2x32xf32, #tpu.memory_space<vmem>>) attributes {dimension_semantics = [], scalar_prefetch = 0 : i64, scratch_operands = 3 : i64, tpu.core_type = #tpu.core_type<tc>} {
    %cst = arith.constant 0.000000e+00 : f32
    %0 = vector.broadcast %cst : f32 to vector<4x32xf32>
    %c0 = arith.constant 0 : index
    %c0_0 = arith.constant 0 : index
    %1 = vector.load %arg5[%c0, %c0_0] : memref<4x32xf32, #tpu.memory_space<vmem>>, vector<4x32xf32>
    tpu.vector_store %arg5[%c0, %c0_0], %0 {strides = array<i32>} : memref<4x32xf32, #tpu.memory_space<vmem>>, vector<4x32xf32>,
    %c0_1 = arith.constant 0 : index
    %c0_2 = arith.constant 0 : index
    %2 = vector.load %arg1[%c0_1, %c0_2] : memref<32x192xf32, #tpu.memory_space<vmem>>, vector<32x192xf32>
    %c0_3 = arith.constant 0 : index
    %c0_4 = arith.constant 0 : index
    %3 = vector.load %arg2[%c0_3, %c0_4] : memref<1x192xf32, #tpu.memory_space<vmem>>, vector<1x192xf32>
    %c0_i32 = arith.constant 0 : i32
    %c7_i32 = arith.constant 7 : i32
    %4 = arith.subi %c7_i32, %c0_i32 : i32
    %c0_5 = arith.constant 0 : index
    %c0_6 = arith.constant 0 : index
    %5 = vector.load %arg5[%c0_5, %c0_6] : memref<4x32xf32, #tpu.memory_space<vmem>>, vector<4x32xf32>
    %cst_7 = arith.constant dense<0.000000e+00> : vector<4x192xf32>
    %6 = tpu.matmul %5, %2, %cst_7 {dimension_numbers = #tpu.dot_dimension_numbers<[1], [0], [0], [1], [0, 0, 1, 1], [], []>} : vector<4x32xf32>, vector<32x192xf32>, vector<4x192xf32> -> vector<4x192xf32>
    %7 = vector.broadcast %3 : vector<1x192xf32> to vector<4x192xf32>
    %8 = arith.addf %6, %7 : vector<4x192xf32>
    %9 = vector.extract_strided_slice %8 {offsets = [0, 0], sizes = [2, 96], strides = [1, 1]} : vector<4x192xf32> to vector<2x96xf32>
    %10 = vector.extract_strided_slice %8 {offsets = [2, 96], sizes = [2, 96], strides = [1, 1]} : vector<4x192xf32> to vector<2x96xf32>
    %11 = tpu.concatenate %9, %10 in 0 : vector<2x96xf32>, vector<2x96xf32> -> vector<4x96xf32>
    %12 = arith.index_cast %c0_i32 : i32 to index
    %c0_8 = arith.constant 0 : index
    %c0_9 = arith.constant 0 : index
    %13 = vector.load %arg0[%12, %c0_8, %c0_9] : memref<8x2x192xf32, #tpu.memory_space<vmem>>, vector<1x2x192xf32>
    %14 = vector.shape_cast %13 : vector<1x2x192xf32> to vector<2x192xf32>
    %15 = vector.extract_strided_slice %14 {offsets = [0, 0], sizes = [2, 96], strides = [1, 1]} : vector<2x192xf32> to vector<2x96xf32>
    %16 = arith.index_cast %4 : i32 to index
    %c0_10 = arith.constant 0 : index
    %c0_11 = arith.constant 0 : index
    %17 = vector.load %arg0[%16, %c0_10, %c0_11] : memref<8x2x192xf32, #tpu.memory_space<vmem>>, vector<1x2x192xf32>
    %18 = vector.shape_cast %17 : vector<1x2x192xf32> to vector<2x192xf32>
    %19 = vector.extract_strided_slice %18 {offsets = [0, 96], sizes = [2, 96], strides = [1, 1]} : vector<2x192xf32> to vector<2x96xf32>
    %20 = tpu.concatenate %15, %19 in 0 : vector<2x96xf32>, vector<2x96xf32> -> vector<4x96xf32>
    %21 = vector.extract_strided_slice %20 {offsets = [0, 0], sizes = [4, 32], strides = [1, 1]} : vector<4x96xf32> to vector<4x32xf32>
    %22 = vector.extract_strided_slice %11 {offsets = [0, 0], sizes = [4, 32], strides = [1, 1]} : vector<4x96xf32> to vector<4x32xf32>
    %23 = arith.addf %21, %22 : vector<4x32xf32>
    %24 = arith.negf %23 : vector<4x32xf32>
    %25 = math.exp %24 : vector<4x32xf32>
    %cst_12 = arith.constant 1.000000e+00 : f32
    %26 = vector.broadcast %cst_12 : f32 to vector<4x32xf32>
    %27 = arith.addf %26, %25 : vector<4x32xf32>
    %28 = arith.divf %26, %27 : vector<4x32xf32>
    %29 = vector.extract_strided_slice %20 {offsets = [0, 32], sizes = [4, 32], strides = [1, 1]} : vector<4x96xf32> to vector<4x32xf32>
    %30 = vector.extract_strided_slice %11 {offsets = [0, 32], sizes = [4, 32], strides = [1, 1]} : vector<4x96xf32> to vector<4x32xf32>
    %31 = arith.addf %29, %30 : vector<4x32xf32>
    %32 = arith.negf %31 : vector<4x32xf32>
    %33 = math.exp %32 : vector<4x32xf32>
    %cst_13 = arith.constant 1.000000e+00 : f32
    %34 = vector.broadcast %cst_13 : f32 to vector<4x32xf32>
    %35 = arith.addf %34, %33 : vector<4x32xf32>
    %36 = arith.divf %34, %35 : vector<4x32xf32>
    %37 = vector.extract_strided_slice %20 {offsets = [0, 64], sizes = [4, 32], strides = [1, 1]} : vector<4x96xf32> to vector<4x32xf32>
    %38 = vector.extract_strided_slice %11 {offsets = [0, 64], sizes = [4, 32], strides = [1, 1]} : vector<4x96xf32> to vector<4x32xf32>
    %39 = arith.mulf %28, %38 : vector<4x32xf32>
    %40 = arith.addf %37, %39 : vector<4x32xf32>
    %41 = math.tanh %40 : vector<4x32xf32>
    %cst_14 = arith.constant 1.000000e+00 : f32
    %42 = vector.broadcast %cst_14 : f32 to vector<4x32xf32>
    %43 = arith.subf %42, %36 : vector<4x32xf32>
    %44 = arith.mulf %43, %41 : vector<4x32xf32>
    %45 = arith.mulf %36, %5 : vector<4x32xf32>
    %46 = arith.addf %44, %45 : vector<4x32xf32>
    %c0_15 = arith.constant 0 : index
    %c0_16 = arith.constant 0 : index
    %47 = vector.load %arg5[%c0_15, %c0_16] : memref<4x32xf32, #tpu.memory_space<vmem>>, vector<4x32xf32>
    tpu.vector_store %arg5[%c0_15, %c0_16], %46 {strides = array<i32>} : memref<4x32xf32, #tpu.memory_space<vmem>>, vector<4x32xf32>,
    %48 = vector.extract_strided_slice %46 {offsets = [0, 0], sizes = [2, 32], strides = [1, 1]} : vector<4x32xf32> to vector<2x32xf32>
    %49 = arith.index_cast %c0_i32 : i32 to index
    %c0_17 = arith.constant 0 : index
    %c0_18 = arith.constant 0 : index
    %50 = vector.load %arg6[%49, %c0_17, %c0_18] : memref<8x2x32xf32, #tpu.memory_space<vmem>>, vector<1x2x32xf32>
    %51 = vector.shape_cast %50 : vector<1x2x32xf32> to vector<2x32xf32>
    %52 = vector.shape_cast %48 : vector<2x32xf32> to vector<1x2x32xf32>
    tpu.vector_store %arg6[%49, %c0_17, %c0_18], %52 {strides = array<i32>} : memref<8x2x32xf32, #tpu.memory_space<vmem>>, vector<1x2x32xf32>,
    %53 = vector.extract_strided_slice %46 {offsets = [2, 0], sizes = [2, 32], strides = [1, 1]} : vector<4x32xf32> to vector<2x32xf32>
    %54 = arith.index_cast %4 : i32 to index
    %c0_19 = arith.constant 0 : index
    %c0_20 = arith.constant 0 : index
    %55 = vector.load %arg7[%54, %c0_19, %c0_20] : memref<8x2x32xf32, #tpu.memory_space<vmem>>, vector<1x2x32xf32>
    %56 = vector.shape_cast %55 : vector<1x2x32xf32> to vector<2x32xf32>
    %57 = vector.shape_cast %53 : vector<2x32xf32> to vector<1x2x32xf32>
    tpu.vector_store %arg7[%54, %c0_19, %c0_20], %57 {strides = array<i32>} : memref<8x2x32xf32, #tpu.memory_space<vmem>>, vector<1x2x32xf32>,
    %c1_i32 = arith.constant 1 : i32
    %c7_i32_21 = arith.constant 7 : i32
    %58 = arith.subi %c7_i32_21, %c1_i32 : i32
    %c0_22 = arith.constant 0 : index
    %c0_23 = arith.constant 0 : index
    %59 = vector.load %arg5[%c0_22, %c0_23] : memref<4x32xf32, #tpu.memory_space<vmem>>, vector<4x32xf32>
    %cst_24 = arith.constant dense<0.000000e+00> : vector<4x192xf32>
    %60 = tpu.matmul %59, %2, %cst_24 {dimension_numbers = #tpu.dot_dimension_numbers<[1], [0], [0], [1], [0, 0, 1, 1], [], []>} : vector<4x32xf32>, vector<32x192xf32>, vector<4x192xf32> -> vector<4x192xf32>
    %61 = vector.broadcast %3 : vector<1x192xf32> to vector<4x192xf32>
    %62 = arith.addf %60, %61 : vector<4x192xf32>
    %63 = vector.extract_strided_slice %62 {offsets = [0, 0], sizes = [2, 96], strides = [1, 1]} : vector<4x192xf32> to vector<2x96xf32>
    %64 = vector.extract_strided_slice %62 {offsets = [2, 96], sizes = [2, 96], strides = [1, 1]} : vector<4x192xf32> to vector<2x96xf32>
    %65 = tpu.concatenate %63, %64 in 0 : vector<2x96xf32>, vector<2x96xf32> -> vector<4x96xf32>
    %66 = arith.index_cast %c1_i32 : i32 to index
    %c0_25 = arith.constant 0 : index
    %c0_26 = arith.constant 0 : index
    %67 = vector.load %arg0[%66, %c0_25, %c0_26] : memref<8x2x192xf32, #tpu.memory_space<vmem>>, vector<1x2x192xf32>
    %68 = vector.shape_cast %67 : vector<1x2x192xf32> to vector<2x192xf32>
    %69 = vector.extract_strided_slice %68 {offsets = [0, 0], sizes = [2, 96], strides = [1, 1]} : vector<2x192xf32> to vector<2x96xf32>
    %70 = arith.index_cast %58 : i32 to index
    %c0_27 = arith.constant 0 : index
    %c0_28 = arith.constant 0 : index
    %71 = vector.load %arg0[%70, %c0_27, %c0_28] : memref<8x2x192xf32, #tpu.memory_space<vmem>>, vector<1x2x192xf32>
    %72 = vector.shape_cast %71 : vector<1x2x192xf32> to vector<2x192xf32>
    %73 = vector.extract_strided_slice %72 {offsets = [0, 96], sizes = [2, 96], strides = [1, 1]} : vector<2x192xf32> to vector<2x96xf32>
    %74 = tpu.concatenate %69, %73 in 0 : vector<2x96xf32>, vector<2x96xf32> -> vector<4x96xf32>
    %75 = vector.extract_strided_slice %74 {offsets = [0, 0], sizes = [4, 32], strides = [1, 1]} : vector<4x96xf32> to vector<4x32xf32>
    %76 = vector.extract_strided_slice %65 {offsets = [0, 0], sizes = [4, 32], strides = [1, 1]} : vector<4x96xf32> to vector<4x32xf32>
    %77 = arith.addf %75, %76 : vector<4x32xf32>
    %78 = arith.negf %77 : vector<4x32xf32>
    %79 = math.exp %78 : vector<4x32xf32>
    %cst_29 = arith.constant 1.000000e+00 : f32
    %80 = vector.broadcast %cst_29 : f32 to vector<4x32xf32>
    %81 = arith.addf %80, %79 : vector<4x32xf32>
    %82 = arith.divf %80, %81 : vector<4x32xf32>
    %83 = vector.extract_strided_slice %74 {offsets = [0, 32], sizes = [4, 32], strides = [1, 1]} : vector<4x96xf32> to vector<4x32xf32>
    %84 = vector.extract_strided_slice %65 {offsets = [0, 32], sizes = [4, 32], strides = [1, 1]} : vector<4x96xf32> to vector<4x32xf32>
    %85 = arith.addf %83, %84 : vector<4x32xf32>
    %86 = arith.negf %85 : vector<4x32xf32>
    %87 = math.exp %86 : vector<4x32xf32>
    %cst_30 = arith.constant 1.000000e+00 : f32
    %88 = vector.broadcast %cst_30 : f32 to vector<4x32xf32>
    %89 = arith.addf %88, %87 : vector<4x32xf32>
    %90 = arith.divf %88, %89 : vector<4x32xf32>
    %91 = vector.extract_strided_slice %74 {offsets = [0, 64], sizes = [4, 32], strides = [1, 1]} : vector<4x96xf32> to vector<4x32xf32>
    %92 = vector.extract_strided_slice %65 {offsets = [0, 64], sizes = [4, 32], strides = [1, 1]} : vector<4x96xf32> to vector<4x32xf32>
    %93 = arith.mulf %82, %92 : vector<4x32xf32>
    %94 = arith.addf %91, %93 : vector<4x32xf32>
    %95 = math.tanh %94 : vector<4x32xf32>
    %cst_31 = arith.constant 1.000000e+00 : f32
    %96 = vector.broadcast %cst_31 : f32 to vector<4x32xf32>
    %97 = arith.subf %96, %90 : vector<4x32xf32>
    %98 = arith.mulf %97, %95 : vector<4x32xf32>
    %99 = arith.mulf %90, %59 : vector<4x32xf32>
    %100 = arith.addf %98, %99 : vector<4x32xf32>
    %c0_32 = arith.constant 0 : index
    %c0_33 = arith.constant 0 : index
    %101 = vector.load %arg5[%c0_32, %c0_33] : memref<4x32xf32, #tpu.memory_space<vmem>>, vector<4x32xf32>
    tpu.vector_store %arg5[%c0_32, %c0_33], %100 {strides = array<i32>} : memref<4x32xf32, #tpu.memory_space<vmem>>, vector<4x32xf32>,
    %102 = vector.extract_strided_slice %100 {offsets = [0, 0], sizes = [2, 32], strides = [1, 1]} : vector<4x32xf32> to vector<2x32xf32>
    %103 = arith.index_cast %c1_i32 : i32 to index
    %c0_34 = arith.constant 0 : index
    %c0_35 = arith.constant 0 : index
    %104 = vector.load %arg6[%103, %c0_34, %c0_35] : memref<8x2x32xf32, #tpu.memory_space<vmem>>, vector<1x2x32xf32>
    %105 = vector.shape_cast %104 : vector<1x2x32xf32> to vector<2x32xf32>
    %106 = vector.shape_cast %102 : vector<2x32xf32> to vector<1x2x32xf32>
    tpu.vector_store %arg6[%103, %c0_34, %c0_35], %106 {strides = array<i32>} : memref<8x2x32xf32, #tpu.memory_space<vmem>>, vector<1x2x32xf32>,
    %107 = vector.extract_strided_slice %100 {offsets = [2, 0], sizes = [2, 32], strides = [1, 1]} : vector<4x32xf32> to vector<2x32xf32>
    %108 = arith.index_cast %58 : i32 to index
    %c0_36 = arith.constant 0 : index
    %c0_37 = arith.constant 0 : index
    %109 = vector.load %arg7[%108, %c0_36, %c0_37] : memref<8x2x32xf32, #tpu.memory_space<vmem>>, vector<1x2x32xf32>
    %110 = vector.shape_cast %109 : vector<1x2x32xf32> to vector<2x32xf32>
    %111 = vector.shape_cast %107 : vector<2x32xf32> to vector<1x2x32xf32>
    tpu.vector_store %arg7[%108, %c0_36, %c0_37], %111 {strides = array<i32>} : memref<8x2x32xf32, #tpu.memory_space<vmem>>, vector<1x2x32xf32>,
    %c2_i32 = arith.constant 2 : i32
    %c7_i32_38 = arith.constant 7 : i32
    %112 = arith.subi %c7_i32_38, %c2_i32 : i32
    %c0_39 = arith.constant 0 : index
    %c0_40 = arith.constant 0 : index
    %113 = vector.load %arg5[%c0_39, %c0_40] : memref<4x32xf32, #tpu.memory_space<vmem>>, vector<4x32xf32>
    %cst_41 = arith.constant dense<0.000000e+00> : vector<4x192xf32>
    %114 = tpu.matmul %113, %2, %cst_41 {dimension_numbers = #tpu.dot_dimension_numbers<[1], [0], [0], [1], [0, 0, 1, 1], [], []>} : vector<4x32xf32>, vector<32x192xf32>, vector<4x192xf32> -> vector<4x192xf32>
    %115 = vector.broadcast %3 : vector<1x192xf32> to vector<4x192xf32>
    %116 = arith.addf %114, %115 : vector<4x192xf32>
    %117 = vector.extract_strided_slice %116 {offsets = [0, 0], sizes = [2, 96], strides = [1, 1]} : vector<4x192xf32> to vector<2x96xf32>
    %118 = vector.extract_strided_slice %116 {offsets = [2, 96], sizes = [2, 96], strides = [1, 1]} : vector<4x192xf32> to vector<2x96xf32>
    %119 = tpu.concatenate %117, %118 in 0 : vector<2x96xf32>, vector<2x96xf32> -> vector<4x96xf32>
    %120 = arith.index_cast %c2_i32 : i32 to index
    %c0_42 = arith.constant 0 : index
    %c0_43 = arith.constant 0 : index
    %121 = vector.load %arg0[%120, %c0_42, %c0_43] : memref<8x2x192xf32, #tpu.memory_space<vmem>>, vector<1x2x192xf32>
    %122 = vector.shape_cast %121 : vector<1x2x192xf32> to vector<2x192xf32>
    %123 = vector.extract_strided_slice %122 {offsets = [0, 0], sizes = [2, 96], strides = [1, 1]} : vector<2x192xf32> to vector<2x96xf32>
    %124 = arith.index_cast %112 : i32 to index
    %c0_44 = arith.constant 0 : index
    %c0_45 = arith.constant 0 : index
    %125 = vector.load %arg0[%124, %c0_44, %c0_45] : memref<8x2x192xf32, #tpu.memory_space<vmem>>, vector<1x2x192xf32>
    %126 = vector.shape_cast %125 : vector<1x2x192xf32> to vector<2x192xf32>
    %127 = vector.extract_strided_slice %126 {offsets = [0, 96], sizes = [2, 96], strides = [1, 1]} : vector<2x192xf32> to vector<2x96xf32>
    %128 = tpu.concatenate %123, %127 in 0 : vector<2x96xf32>, vector<2x96xf32> -> vector<4x96xf32>
    %129 = vector.extract_strided_slice %128 {offsets = [0, 0], sizes = [4, 32], strides = [1, 1]} : vector<4x96xf32> to vector<4x32xf32>
    %130 = vector.extract_strided_slice %119 {offsets = [0, 0], sizes = [4, 32], strides = [1, 1]} : vector<4x96xf32> to vector<4x32xf32>
    %131 = arith.addf %129, %130 : vector<4x32xf32>
    %132 = arith.negf %131 : vector<4x32xf32>
    %133 = math.exp %132 : vector<4x32xf32>
    %cst_46 = arith.constant 1.000000e+00 : f32
    %134 = vector.broadcast %cst_46 : f32 to vector<4x32xf32>
    %135 = arith.addf %134, %133 : vector<4x32xf32>
    %136 = arith.divf %134, %135 : vector<4x32xf32>
    %137 = vector.extract_strided_slice %128 {offsets = [0, 32], sizes = [4, 32], strides = [1, 1]} : vector<4x96xf32> to vector<4x32xf32>
    %138 = vector.extract_strided_slice %119 {offsets = [0, 32], sizes = [4, 32], strides = [1, 1]} : vector<4x96xf32> to vector<4x32xf32>
    %139 = arith.addf %137, %138 : vector<4x32xf32>
    %140 = arith.negf %139 : vector<4x32xf32>
    %141 = math.exp %140 : vector<4x32xf32>
    %cst_47 = arith.constant 1.000000e+00 : f32
    %142 = vector.broadcast %cst_47 : f32 to vector<4x32xf32>
    %143 = arith.addf %142, %141 : vector<4x32xf32>
    %144 = arith.divf %142, %143 : vector<4x32xf32>
    %145 = vector.extract_strided_slice %128 {offsets = [0, 64], sizes = [4, 32], strides = [1, 1]} : vector<4x96xf32> to vector<4x32xf32>
    %146 = vector.extract_strided_slice %119 {offsets = [0, 64], sizes = [4, 32], strides = [1, 1]} : vector<4x96xf32> to vector<4x32xf32>
    %147 = arith.mulf %136, %146 : vector<4x32xf32>
    %148 = arith.addf %145, %147 : vector<4x32xf32>
    %149 = math.tanh %148 : vector<4x32xf32>
    %cst_48 = arith.constant 1.000000e+00 : f32
    %150 = vector.broadcast %cst_48 : f32 to vector<4x32xf32>
    %151 = arith.subf %150, %144 : vector<4x32xf32>
    %152 = arith.mulf %151, %149 : vector<4x32xf32>
    %153 = arith.mulf %144, %113 : vector<4x32xf32>
    %154 = arith.addf %152, %153 : vector<4x32xf32>
    %c0_49 = arith.constant 0 : index
    %c0_50 = arith.constant 0 : index
    %155 = vector.load %arg5[%c0_49, %c0_50] : memref<4x32xf32, #tpu.memory_space<vmem>>, vector<4x32xf32>
    tpu.vector_store %arg5[%c0_49, %c0_50], %154 {strides = array<i32>} : memref<4x32xf32, #tpu.memory_space<vmem>>, vector<4x32xf32>,
    %156 = vector.extract_strided_slice %154 {offsets = [0, 0], sizes = [2, 32], strides = [1, 1]} : vector<4x32xf32> to vector<2x32xf32>
    %157 = arith.index_cast %c2_i32 : i32 to index
    %c0_51 = arith.constant 0 : index
    %c0_52 = arith.constant 0 : index
    %158 = vector.load %arg6[%157, %c0_51, %c0_52] : memref<8x2x32xf32, #tpu.memory_space<vmem>>, vector<1x2x32xf32>
    %159 = vector.shape_cast %158 : vector<1x2x32xf32> to vector<2x32xf32>
    %160 = vector.shape_cast %156 : vector<2x32xf32> to vector<1x2x32xf32>
    tpu.vector_store %arg6[%157, %c0_51, %c0_52], %160 {strides = array<i32>} : memref<8x2x32xf32, #tpu.memory_space<vmem>>, vector<1x2x32xf32>,
    %161 = vector.extract_strided_slice %154 {offsets = [2, 0], sizes = [2, 32], strides = [1, 1]} : vector<4x32xf32> to vector<2x32xf32>
    %162 = arith.index_cast %112 : i32 to index
    %c0_53 = arith.constant 0 : index
    %c0_54 = arith.constant 0 : index
    %163 = vector.load %arg7[%162, %c0_53, %c0_54] : memref<8x2x32xf32, #tpu.memory_space<vmem>>, vector<1x2x32xf32>
    %164 = vector.shape_cast %163 : vector<1x2x32xf32> to vector<2x32xf32>
    %165 = vector.shape_cast %161 : vector<2x32xf32> to vector<1x2x32xf32>
    tpu.vector_store %arg7[%162, %c0_53, %c0_54], %165 {strides = array<i32>} : memref<8x2x32xf32, #tpu.memory_space<vmem>>, vector<1x2x32xf32>,
    %c3_i32 = arith.constant 3 : i32
    %c7_i32_55 = arith.constant 7 : i32
    %166 = arith.subi %c7_i32_55, %c3_i32 : i32
    %c0_56 = arith.constant 0 : index
    %c0_57 = arith.constant 0 : index
    %167 = vector.load %arg5[%c0_56, %c0_57] : memref<4x32xf32, #tpu.memory_space<vmem>>, vector<4x32xf32>
    %cst_58 = arith.constant dense<0.000000e+00> : vector<4x192xf32>
    %168 = tpu.matmul %167, %2, %cst_58 {dimension_numbers = #tpu.dot_dimension_numbers<[1], [0], [0], [1], [0, 0, 1, 1], [], []>} : vector<4x32xf32>, vector<32x192xf32>, vector<4x192xf32> -> vector<4x192xf32>
    %169 = vector.broadcast %3 : vector<1x192xf32> to vector<4x192xf32>
    %170 = arith.addf %168, %169 : vector<4x192xf32>
    %171 = vector.extract_strided_slice %170 {offsets = [0, 0], sizes = [2, 96], strides = [1, 1]} : vector<4x192xf32> to vector<2x96xf32>
    %172 = vector.extract_strided_slice %170 {offsets = [2, 96], sizes = [2, 96], strides = [1, 1]} : vector<4x192xf32> to vector<2x96xf32>
    %173 = tpu.concatenate %171, %172 in 0 : vector<2x96xf32>, vector<2x96xf32> -> vector<4x96xf32>
    %174 = arith.index_cast %c3_i32 : i32 to index
    %c0_59 = arith.constant 0 : index
    %c0_60 = arith.constant 0 : index
    %175 = vector.load %arg0[%174, %c0_59, %c0_60] : memref<8x2x192xf32, #tpu.memory_space<vmem>>, vector<1x2x192xf32>
    %176 = vector.shape_cast %175 : vector<1x2x192xf32> to vector<2x192xf32>
    %177 = vector.extract_strided_slice %176 {offsets = [0, 0], sizes = [2, 96], strides = [1, 1]} : vector<2x192xf32> to vector<2x96xf32>
    %178 = arith.index_cast %166 : i32 to index
    %c0_61 = arith.constant 0 : index
    %c0_62 = arith.constant 0 : index
    %179 = vector.load %arg0[%178, %c0_61, %c0_62] : memref<8x2x192xf32, #tpu.memory_space<vmem>>, vector<1x2x192xf32>
    %180 = vector.shape_cast %179 : vector<1x2x192xf32> to vector<2x192xf32>
    %181 = vector.extract_strided_slice %180 {offsets = [0, 96], sizes = [2, 96], strides = [1, 1]} : vector<2x192xf32> to vector<2x96xf32>
    %182 = tpu.concatenate %177, %181 in 0 : vector<2x96xf32>, vector<2x96xf32> -> vector<4x96xf32>
    %183 = vector.extract_strided_slice %182 {offsets = [0, 0], sizes = [4, 32], strides = [1, 1]} : vector<4x96xf32> to vector<4x32xf32>
    %184 = vector.extract_strided_slice %173 {offsets = [0, 0], sizes = [4, 32], strides = [1, 1]} : vector<4x96xf32> to vector<4x32xf32>
    %185 = arith.addf %183, %184 : vector<4x32xf32>
    %186 = arith.negf %185 : vector<4x32xf32>
    %187 = math.exp %186 : vector<4x32xf32>
    %cst_63 = arith.constant 1.000000e+00 : f32
    %188 = vector.broadcast %cst_63 : f32 to vector<4x32xf32>
    %189 = arith.addf %188, %187 : vector<4x32xf32>
    %190 = arith.divf %188, %189 : vector<4x32xf32>
    %191 = vector.extract_strided_slice %182 {offsets = [0, 32], sizes = [4, 32], strides = [1, 1]} : vector<4x96xf32> to vector<4x32xf32>
    %192 = vector.extract_strided_slice %173 {offsets = [0, 32], sizes = [4, 32], strides = [1, 1]} : vector<4x96xf32> to vector<4x32xf32>
    %193 = arith.addf %191, %192 : vector<4x32xf32>
    %194 = arith.negf %193 : vector<4x32xf32>
    %195 = math.exp %194 : vector<4x32xf32>
    %cst_64 = arith.constant 1.000000e+00 : f32
    %196 = vector.broadcast %cst_64 : f32 to vector<4x32xf32>
    %197 = arith.addf %196, %195 : vector<4x32xf32>
    %198 = arith.divf %196, %197 : vector<4x32xf32>
    %199 = vector.extract_strided_slice %182 {offsets = [0, 64], sizes = [4, 32], strides = [1, 1]} : vector<4x96xf32> to vector<4x32xf32>
    %200 = vector.extract_strided_slice %173 {offsets = [0, 64], sizes = [4, 32], strides = [1, 1]} : vector<4x96xf32> to vector<4x32xf32>
    %201 = arith.mulf %190, %200 : vector<4x32xf32>
    %202 = arith.addf %199, %201 : vector<4x32xf32>
    %203 = math.tanh %202 : vector<4x32xf32>
    %cst_65 = arith.constant 1.000000e+00 : f32
    %204 = vector.broadcast %cst_65 : f32 to vector<4x32xf32>
    %205 = arith.subf %204, %198 : vector<4x32xf32>
    %206 = arith.mulf %205, %203 : vector<4x32xf32>
    %207 = arith.mulf %198, %167 : vector<4x32xf32>
    %208 = arith.addf %206, %207 : vector<4x32xf32>
    %c0_66 = arith.constant 0 : index
    %c0_67 = arith.constant 0 : index
    %209 = vector.load %arg5[%c0_66, %c0_67] : memref<4x32xf32, #tpu.memory_space<vmem>>, vector<4x32xf32>
    tpu.vector_store %arg5[%c0_66, %c0_67], %208 {strides = array<i32>} : memref<4x32xf32, #tpu.memory_space<vmem>>, vector<4x32xf32>,
    %210 = vector.extract_strided_slice %208 {offsets = [0, 0], sizes = [2, 32], strides = [1, 1]} : vector<4x32xf32> to vector<2x32xf32>
    %211 = arith.index_cast %c3_i32 : i32 to index
    %c0_68 = arith.constant 0 : index
    %c0_69 = arith.constant 0 : index
    %212 = vector.load %arg6[%211, %c0_68, %c0_69] : memref<8x2x32xf32, #tpu.memory_space<vmem>>, vector<1x2x32xf32>
    %213 = vector.shape_cast %212 : vector<1x2x32xf32> to vector<2x32xf32>
    %214 = vector.shape_cast %210 : vector<2x32xf32> to vector<1x2x32xf32>
    tpu.vector_store %arg6[%211, %c0_68, %c0_69], %214 {strides = array<i32>} : memref<8x2x32xf32, #tpu.memory_space<vmem>>, vector<1x2x32xf32>,
    %215 = vector.extract_strided_slice %208 {offsets = [2, 0], sizes = [2, 32], strides = [1, 1]} : vector<4x32xf32> to vector<2x32xf32>
    %216 = arith.index_cast %166 : i32 to index
    %c0_70 = arith.constant 0 : index
    %c0_71 = arith.constant 0 : index
    %217 = vector.load %arg7[%216, %c0_70, %c0_71] : memref<8x2x32xf32, #tpu.memory_space<vmem>>, vector<1x2x32xf32>
    %218 = vector.shape_cast %217 : vector<1x2x32xf32> to vector<2x32xf32>
    %219 = vector.shape_cast %215 : vector<2x32xf32> to vector<1x2x32xf32>
    tpu.vector_store %arg7[%216, %c0_70, %c0_71], %219 {strides = array<i32>} : memref<8x2x32xf32, #tpu.memory_space<vmem>>, vector<1x2x32xf32>,
    %c4_i32 = arith.constant 4 : i32
    %c7_i32_72 = arith.constant 7 : i32
    %220 = arith.subi %c7_i32_72, %c4_i32 : i32
    %c0_73 = arith.constant 0 : index
    %c0_74 = arith.constant 0 : index
    %221 = vector.load %arg5[%c0_73, %c0_74] : memref<4x32xf32, #tpu.memory_space<vmem>>, vector<4x32xf32>
    %cst_75 = arith.constant dense<0.000000e+00> : vector<4x192xf32>
    %222 = tpu.matmul %221, %2, %cst_75 {dimension_numbers = #tpu.dot_dimension_numbers<[1], [0], [0], [1], [0, 0, 1, 1], [], []>} : vector<4x32xf32>, vector<32x192xf32>, vector<4x192xf32> -> vector<4x192xf32>
    %223 = vector.broadcast %3 : vector<1x192xf32> to vector<4x192xf32>
    %224 = arith.addf %222, %223 : vector<4x192xf32>
    %225 = vector.extract_strided_slice %224 {offsets = [0, 0], sizes = [2, 96], strides = [1, 1]} : vector<4x192xf32> to vector<2x96xf32>
    %226 = vector.extract_strided_slice %224 {offsets = [2, 96], sizes = [2, 96], strides = [1, 1]} : vector<4x192xf32> to vector<2x96xf32>
    %227 = tpu.concatenate %225, %226 in 0 : vector<2x96xf32>, vector<2x96xf32> -> vector<4x96xf32>
    %228 = arith.index_cast %c4_i32 : i32 to index
    %c0_76 = arith.constant 0 : index
    %c0_77 = arith.constant 0 : index
    %229 = vector.load %arg0[%228, %c0_76, %c0_77] : memref<8x2x192xf32, #tpu.memory_space<vmem>>, vector<1x2x192xf32>
    %230 = vector.shape_cast %229 : vector<1x2x192xf32> to vector<2x192xf32>
    %231 = vector.extract_strided_slice %230 {offsets = [0, 0], sizes = [2, 96], strides = [1, 1]} : vector<2x192xf32> to vector<2x96xf32>
    %232 = arith.index_cast %220 : i32 to index
    %c0_78 = arith.constant 0 : index
    %c0_79 = arith.constant 0 : index
    %233 = vector.load %arg0[%232, %c0_78, %c0_79] : memref<8x2x192xf32, #tpu.memory_space<vmem>>, vector<1x2x192xf32>
    %234 = vector.shape_cast %233 : vector<1x2x192xf32> to vector<2x192xf32>
    %235 = vector.extract_strided_slice %234 {offsets = [0, 96], sizes = [2, 96], strides = [1, 1]} : vector<2x192xf32> to vector<2x96xf32>
    %236 = tpu.concatenate %231, %235 in 0 : vector<2x96xf32>, vector<2x96xf32> -> vector<4x96xf32>
    %237 = vector.extract_strided_slice %236 {offsets = [0, 0], sizes = [4, 32], strides = [1, 1]} : vector<4x96xf32> to vector<4x32xf32>
    %238 = vector.extract_strided_slice %227 {offsets = [0, 0], sizes = [4, 32], strides = [1, 1]} : vector<4x96xf32> to vector<4x32xf32>
    %239 = arith.addf %237, %238 : vector<4x32xf32>
    %240 = arith.negf %239 : vector<4x32xf32>
    %241 = math.exp %240 : vector<4x32xf32>
    %cst_80 = arith.constant 1.000000e+00 : f32
    %242 = vector.broadcast %cst_80 : f32 to vector<4x32xf32>
    %243 = arith.addf %242, %241 : vector<4x32xf32>
    %244 = arith.divf %242, %243 : vector<4x32xf32>
    %245 = vector.extract_strided_slice %236 {offsets = [0, 32], sizes = [4, 32], strides = [1, 1]} : vector<4x96xf32> to vector<4x32xf32>
    %246 = vector.extract_strided_slice %227 {offsets = [0, 32], sizes = [4, 32], strides = [1, 1]} : vector<4x96xf32> to vector<4x32xf32>
    %247 = arith.addf %245, %246 : vector<4x32xf32>
    %248 = arith.negf %247 : vector<4x32xf32>
    %249 = math.exp %248 : vector<4x32xf32>
    %cst_81 = arith.constant 1.000000e+00 : f32
    %250 = vector.broadcast %cst_81 : f32 to vector<4x32xf32>
    %251 = arith.addf %250, %249 : vector<4x32xf32>
    %252 = arith.divf %250, %251 : vector<4x32xf32>
    %253 = vector.extract_strided_slice %236 {offsets = [0, 64], sizes = [4, 32], strides = [1, 1]} : vector<4x96xf32> to vector<4x32xf32>
    %254 = vector.extract_strided_slice %227 {offsets = [0, 64], sizes = [4, 32], strides = [1, 1]} : vector<4x96xf32> to vector<4x32xf32>
    %255 = arith.mulf %244, %254 : vector<4x32xf32>
    %256 = arith.addf %253, %255 : vector<4x32xf32>
    %257 = math.tanh %256 : vector<4x32xf32>
    %cst_82 = arith.constant 1.000000e+00 : f32
    %258 = vector.broadcast %cst_82 : f32 to vector<4x32xf32>
    %259 = arith.subf %258, %252 : vector<4x32xf32>
    %260 = arith.mulf %259, %257 : vector<4x32xf32>
    %261 = arith.mulf %252, %221 : vector<4x32xf32>
    %262 = arith.addf %260, %261 : vector<4x32xf32>
    %c0_83 = arith.constant 0 : index
    %c0_84 = arith.constant 0 : index
    %263 = vector.load %arg5[%c0_83, %c0_84] : memref<4x32xf32, #tpu.memory_space<vmem>>, vector<4x32xf32>
    tpu.vector_store %arg5[%c0_83, %c0_84], %262 {strides = array<i32>} : memref<4x32xf32, #tpu.memory_space<vmem>>, vector<4x32xf32>,
    %264 = vector.extract_strided_slice %262 {offsets = [0, 0], sizes = [2, 32], strides = [1, 1]} : vector<4x32xf32> to vector<2x32xf32>
    %265 = arith.index_cast %c4_i32 : i32 to index
    %c0_85 = arith.constant 0 : index
    %c0_86 = arith.constant 0 : index
    %266 = vector.load %arg6[%265, %c0_85, %c0_86] : memref<8x2x32xf32, #tpu.memory_space<vmem>>, vector<1x2x32xf32>
    %267 = vector.shape_cast %266 : vector<1x2x32xf32> to vector<2x32xf32>
    %268 = vector.shape_cast %264 : vector<2x32xf32> to vector<1x2x32xf32>
    tpu.vector_store %arg6[%265, %c0_85, %c0_86], %268 {strides = array<i32>} : memref<8x2x32xf32, #tpu.memory_space<vmem>>, vector<1x2x32xf32>,
    %269 = vector.extract_strided_slice %262 {offsets = [2, 0], sizes = [2, 32], strides = [1, 1]} : vector<4x32xf32> to vector<2x32xf32>
    %270 = arith.index_cast %220 : i32 to index
    %c0_87 = arith.constant 0 : index
    %c0_88 = arith.constant 0 : index
    %271 = vector.load %arg7[%270, %c0_87, %c0_88] : memref<8x2x32xf32, #tpu.memory_space<vmem>>, vector<1x2x32xf32>
    %272 = vector.shape_cast %271 : vector<1x2x32xf32> to vector<2x32xf32>
    %273 = vector.shape_cast %269 : vector<2x32xf32> to vector<1x2x32xf32>
    tpu.vector_store %arg7[%270, %c0_87, %c0_88], %273 {strides = array<i32>} : memref<8x2x32xf32, #tpu.memory_space<vmem>>, vector<1x2x32xf32>,
    %c5_i32 = arith.constant 5 : i32
    %c7_i32_89 = arith.constant 7 : i32
    %274 = arith.subi %c7_i32_89, %c5_i32 : i32
    %c0_90 = arith.constant 0 : index
    %c0_91 = arith.constant 0 : index
    %275 = vector.load %arg5[%c0_90, %c0_91] : memref<4x32xf32, #tpu.memory_space<vmem>>, vector<4x32xf32>
    %cst_92 = arith.constant dense<0.000000e+00> : vector<4x192xf32>
    %276 = tpu.matmul %275, %2, %cst_92 {dimension_numbers = #tpu.dot_dimension_numbers<[1], [0], [0], [1], [0, 0, 1, 1], [], []>} : vector<4x32xf32>, vector<32x192xf32>, vector<4x192xf32> -> vector<4x192xf32>
    %277 = vector.broadcast %3 : vector<1x192xf32> to vector<4x192xf32>
    %278 = arith.addf %276, %277 : vector<4x192xf32>
    %279 = vector.extract_strided_slice %278 {offsets = [0, 0], sizes = [2, 96], strides = [1, 1]} : vector<4x192xf32> to vector<2x96xf32>
    %280 = vector.extract_strided_slice %278 {offsets = [2, 96], sizes = [2, 96], strides = [1, 1]} : vector<4x192xf32> to vector<2x96xf32>
    %281 = tpu.concatenate %279, %280 in 0 : vector<2x96xf32>, vector<2x96xf32> -> vector<4x96xf32>
    %282 = arith.index_cast %c5_i32 : i32 to index
    %c0_93 = arith.constant 0 : index
    %c0_94 = arith.constant 0 : index
    %283 = vector.load %arg0[%282, %c0_93, %c0_94] : memref<8x2x192xf32, #tpu.memory_space<vmem>>, vector<1x2x192xf32>
    %284 = vector.shape_cast %283 : vector<1x2x192xf32> to vector<2x192xf32>
    %285 = vector.extract_strided_slice %284 {offsets = [0, 0], sizes = [2, 96], strides = [1, 1]} : vector<2x192xf32> to vector<2x96xf32>
    %286 = arith.index_cast %274 : i32 to index
    %c0_95 = arith.constant 0 : index
    %c0_96 = arith.constant 0 : index
    %287 = vector.load %arg0[%286, %c0_95, %c0_96] : memref<8x2x192xf32, #tpu.memory_space<vmem>>, vector<1x2x192xf32>
    %288 = vector.shape_cast %287 : vector<1x2x192xf32> to vector<2x192xf32>
    %289 = vector.extract_strided_slice %288 {offsets = [0, 96], sizes = [2, 96], strides = [1, 1]} : vector<2x192xf32> to vector<2x96xf32>
    %290 = tpu.concatenate %285, %289 in 0 : vector<2x96xf32>, vector<2x96xf32> -> vector<4x96xf32>
    %291 = vector.extract_strided_slice %290 {offsets = [0, 0], sizes = [4, 32], strides = [1, 1]} : vector<4x96xf32> to vector<4x32xf32>
    %292 = vector.extract_strided_slice %281 {offsets = [0, 0], sizes = [4, 32], strides = [1, 1]} : vector<4x96xf32> to vector<4x32xf32>
    %293 = arith.addf %291, %292 : vector<4x32xf32>
    %294 = arith.negf %293 : vector<4x32xf32>
    %295 = math.exp %294 : vector<4x32xf32>
    %cst_97 = arith.constant 1.000000e+00 : f32
    %296 = vector.broadcast %cst_97 : f32 to vector<4x32xf32>
    %297 = arith.addf %296, %295 : vector<4x32xf32>
    %298 = arith.divf %296, %297 : vector<4x32xf32>
    %299 = vector.extract_strided_slice %290 {offsets = [0, 32], sizes = [4, 32], strides = [1, 1]} : vector<4x96xf32> to vector<4x32xf32>
    %300 = vector.extract_strided_slice %281 {offsets = [0, 32], sizes = [4, 32], strides = [1, 1]} : vector<4x96xf32> to vector<4x32xf32>
    %301 = arith.addf %299, %300 : vector<4x32xf32>
    %302 = arith.negf %301 : vector<4x32xf32>
    %303 = math.exp %302 : vector<4x32xf32>
    %cst_98 = arith.constant 1.000000e+00 : f32
    %304 = vector.broadcast %cst_98 : f32 to vector<4x32xf32>
    %305 = arith.addf %304, %303 : vector<4x32xf32>
    %306 = arith.divf %304, %305 : vector<4x32xf32>
    %307 = vector.extract_strided_slice %290 {offsets = [0, 64], sizes = [4, 32], strides = [1, 1]} : vector<4x96xf32> to vector<4x32xf32>
    %308 = vector.extract_strided_slice %281 {offsets = [0, 64], sizes = [4, 32], strides = [1, 1]} : vector<4x96xf32> to vector<4x32xf32>
    %309 = arith.mulf %298, %308 : vector<4x32xf32>
    %310 = arith.addf %307, %309 : vector<4x32xf32>
    %311 = math.tanh %310 : vector<4x32xf32>
    %cst_99 = arith.constant 1.000000e+00 : f32
    %312 = vector.broadcast %cst_99 : f32 to vector<4x32xf32>
    %313 = arith.subf %312, %306 : vector<4x32xf32>
    %314 = arith.mulf %313, %311 : vector<4x32xf32>
    %315 = arith.mulf %306, %275 : vector<4x32xf32>
    %316 = arith.addf %314, %315 : vector<4x32xf32>
    %c0_100 = arith.constant 0 : index
    %c0_101 = arith.constant 0 : index
    %317 = vector.load %arg5[%c0_100, %c0_101] : memref<4x32xf32, #tpu.memory_space<vmem>>, vector<4x32xf32>
    tpu.vector_store %arg5[%c0_100, %c0_101], %316 {strides = array<i32>} : memref<4x32xf32, #tpu.memory_space<vmem>>, vector<4x32xf32>,
    %318 = vector.extract_strided_slice %316 {offsets = [0, 0], sizes = [2, 32], strides = [1, 1]} : vector<4x32xf32> to vector<2x32xf32>
    %319 = arith.index_cast %c5_i32 : i32 to index
    %c0_102 = arith.constant 0 : index
    %c0_103 = arith.constant 0 : index
    %320 = vector.load %arg6[%319, %c0_102, %c0_103] : memref<8x2x32xf32, #tpu.memory_space<vmem>>, vector<1x2x32xf32>
    %321 = vector.shape_cast %320 : vector<1x2x32xf32> to vector<2x32xf32>
    %322 = vector.shape_cast %318 : vector<2x32xf32> to vector<1x2x32xf32>
    tpu.vector_store %arg6[%319, %c0_102, %c0_103], %322 {strides = array<i32>} : memref<8x2x32xf32, #tpu.memory_space<vmem>>, vector<1x2x32xf32>,
    %323 = vector.extract_strided_slice %316 {offsets = [2, 0], sizes = [2, 32], strides = [1, 1]} : vector<4x32xf32> to vector<2x32xf32>
    %324 = arith.index_cast %274 : i32 to index
    %c0_104 = arith.constant 0 : index
    %c0_105 = arith.constant 0 : index
    %325 = vector.load %arg7[%324, %c0_104, %c0_105] : memref<8x2x32xf32, #tpu.memory_space<vmem>>, vector<1x2x32xf32>
    %326 = vector.shape_cast %325 : vector<1x2x32xf32> to vector<2x32xf32>
    %327 = vector.shape_cast %323 : vector<2x32xf32> to vector<1x2x32xf32>
    tpu.vector_store %arg7[%324, %c0_104, %c0_105], %327 {strides = array<i32>} : memref<8x2x32xf32, #tpu.memory_space<vmem>>, vector<1x2x32xf32>,
    %c6_i32 = arith.constant 6 : i32
    %c7_i32_106 = arith.constant 7 : i32
    %328 = arith.subi %c7_i32_106, %c6_i32 : i32
    %c0_107 = arith.constant 0 : index
    %c0_108 = arith.constant 0 : index
    %329 = vector.load %arg5[%c0_107, %c0_108] : memref<4x32xf32, #tpu.memory_space<vmem>>, vector<4x32xf32>
    %cst_109 = arith.constant dense<0.000000e+00> : vector<4x192xf32>
    %330 = tpu.matmul %329, %2, %cst_109 {dimension_numbers = #tpu.dot_dimension_numbers<[1], [0], [0], [1], [0, 0, 1, 1], [], []>} : vector<4x32xf32>, vector<32x192xf32>, vector<4x192xf32> -> vector<4x192xf32>
    %331 = vector.broadcast %3 : vector<1x192xf32> to vector<4x192xf32>
    %332 = arith.addf %330, %331 : vector<4x192xf32>
    %333 = vector.extract_strided_slice %332 {offsets = [0, 0], sizes = [2, 96], strides = [1, 1]} : vector<4x192xf32> to vector<2x96xf32>
    %334 = vector.extract_strided_slice %332 {offsets = [2, 96], sizes = [2, 96], strides = [1, 1]} : vector<4x192xf32> to vector<2x96xf32>
    %335 = tpu.concatenate %333, %334 in 0 : vector<2x96xf32>, vector<2x96xf32> -> vector<4x96xf32>
    %336 = arith.index_cast %c6_i32 : i32 to index
    %c0_110 = arith.constant 0 : index
    %c0_111 = arith.constant 0 : index
    %337 = vector.load %arg0[%336, %c0_110, %c0_111] : memref<8x2x192xf32, #tpu.memory_space<vmem>>, vector<1x2x192xf32>
    %338 = vector.shape_cast %337 : vector<1x2x192xf32> to vector<2x192xf32>
    %339 = vector.extract_strided_slice %338 {offsets = [0, 0], sizes = [2, 96], strides = [1, 1]} : vector<2x192xf32> to vector<2x96xf32>
    %340 = arith.index_cast %328 : i32 to index
    %c0_112 = arith.constant 0 : index
    %c0_113 = arith.constant 0 : index
    %341 = vector.load %arg0[%340, %c0_112, %c0_113] : memref<8x2x192xf32, #tpu.memory_space<vmem>>, vector<1x2x192xf32>
    %342 = vector.shape_cast %341 : vector<1x2x192xf32> to vector<2x192xf32>
    %343 = vector.extract_strided_slice %342 {offsets = [0, 96], sizes = [2, 96], strides = [1, 1]} : vector<2x192xf32> to vector<2x96xf32>
    %344 = tpu.concatenate %339, %343 in 0 : vector<2x96xf32>, vector<2x96xf32> -> vector<4x96xf32>
    %345 = vector.extract_strided_slice %344 {offsets = [0, 0], sizes = [4, 32], strides = [1, 1]} : vector<4x96xf32> to vector<4x32xf32>
    %346 = vector.extract_strided_slice %335 {offsets = [0, 0], sizes = [4, 32], strides = [1, 1]} : vector<4x96xf32> to vector<4x32xf32>
    %347 = arith.addf %345, %346 : vector<4x32xf32>
    %348 = arith.negf %347 : vector<4x32xf32>
    %349 = math.exp %348 : vector<4x32xf32>
    %cst_114 = arith.constant 1.000000e+00 : f32
    %350 = vector.broadcast %cst_114 : f32 to vector<4x32xf32>
    %351 = arith.addf %350, %349 : vector<4x32xf32>
    %352 = arith.divf %350, %351 : vector<4x32xf32>
    %353 = vector.extract_strided_slice %344 {offsets = [0, 32], sizes = [4, 32], strides = [1, 1]} : vector<4x96xf32> to vector<4x32xf32>
    %354 = vector.extract_strided_slice %335 {offsets = [0, 32], sizes = [4, 32], strides = [1, 1]} : vector<4x96xf32> to vector<4x32xf32>
    %355 = arith.addf %353, %354 : vector<4x32xf32>
    %356 = arith.negf %355 : vector<4x32xf32>
    %357 = math.exp %356 : vector<4x32xf32>
    %cst_115 = arith.constant 1.000000e+00 : f32
    %358 = vector.broadcast %cst_115 : f32 to vector<4x32xf32>
    %359 = arith.addf %358, %357 : vector<4x32xf32>
    %360 = arith.divf %358, %359 : vector<4x32xf32>
    %361 = vector.extract_strided_slice %344 {offsets = [0, 64], sizes = [4, 32], strides = [1, 1]} : vector<4x96xf32> to vector<4x32xf32>
    %362 = vector.extract_strided_slice %335 {offsets = [0, 64], sizes = [4, 32], strides = [1, 1]} : vector<4x96xf32> to vector<4x32xf32>
    %363 = arith.mulf %352, %362 : vector<4x32xf32>
    %364 = arith.addf %361, %363 : vector<4x32xf32>
    %365 = math.tanh %364 : vector<4x32xf32>
    %cst_116 = arith.constant 1.000000e+00 : f32
    %366 = vector.broadcast %cst_116 : f32 to vector<4x32xf32>
    %367 = arith.subf %366, %360 : vector<4x32xf32>
    %368 = arith.mulf %367, %365 : vector<4x32xf32>
    %369 = arith.mulf %360, %329 : vector<4x32xf32>
    %370 = arith.addf %368, %369 : vector<4x32xf32>
    %c0_117 = arith.constant 0 : index
    %c0_118 = arith.constant 0 : index
    %371 = vector.load %arg5[%c0_117, %c0_118] : memref<4x32xf32, #tpu.memory_space<vmem>>, vector<4x32xf32>
    tpu.vector_store %arg5[%c0_117, %c0_118], %370 {strides = array<i32>} : memref<4x32xf32, #tpu.memory_space<vmem>>, vector<4x32xf32>,
    %372 = vector.extract_strided_slice %370 {offsets = [0, 0], sizes = [2, 32], strides = [1, 1]} : vector<4x32xf32> to vector<2x32xf32>
    %373 = arith.index_cast %c6_i32 : i32 to index
    %c0_119 = arith.constant 0 : index
    %c0_120 = arith.constant 0 : index
    %374 = vector.load %arg6[%373, %c0_119, %c0_120] : memref<8x2x32xf32, #tpu.memory_space<vmem>>, vector<1x2x32xf32>
    %375 = vector.shape_cast %374 : vector<1x2x32xf32> to vector<2x32xf32>
    %376 = vector.shape_cast %372 : vector<2x32xf32> to vector<1x2x32xf32>
    tpu.vector_store %arg6[%373, %c0_119, %c0_120], %376 {strides = array<i32>} : memref<8x2x32xf32, #tpu.memory_space<vmem>>, vector<1x2x32xf32>,
    %377 = vector.extract_strided_slice %370 {offsets = [2, 0], sizes = [2, 32], strides = [1, 1]} : vector<4x32xf32> to vector<2x32xf32>
    %378 = arith.index_cast %328 : i32 to index
    %c0_121 = arith.constant 0 : index
    %c0_122 = arith.constant 0 : index
    %379 = vector.load %arg7[%378, %c0_121, %c0_122] : memref<8x2x32xf32, #tpu.memory_space<vmem>>, vector<1x2x32xf32>
    %380 = vector.shape_cast %379 : vector<1x2x32xf32> to vector<2x32xf32>
    %381 = vector.shape_cast %377 : vector<2x32xf32> to vector<1x2x32xf32>
    tpu.vector_store %arg7[%378, %c0_121, %c0_122], %381 {strides = array<i32>} : memref<8x2x32xf32, #tpu.memory_space<vmem>>, vector<1x2x32xf32>,
    %c7_i32_123 = arith.constant 7 : i32
    %c7_i32_124 = arith.constant 7 : i32
    %382 = arith.subi %c7_i32_124, %c7_i32_123 : i32
    %c0_125 = arith.constant 0 : index
    %c0_126 = arith.constant 0 : index
    %383 = vector.load %arg5[%c0_125, %c0_126] : memref<4x32xf32, #tpu.memory_space<vmem>>, vector<4x32xf32>
    %cst_127 = arith.constant dense<0.000000e+00> : vector<4x192xf32>
    %384 = tpu.matmul %383, %2, %cst_127 {dimension_numbers = #tpu.dot_dimension_numbers<[1], [0], [0], [1], [0, 0, 1, 1], [], []>} : vector<4x32xf32>, vector<32x192xf32>, vector<4x192xf32> -> vector<4x192xf32>
    %385 = vector.broadcast %3 : vector<1x192xf32> to vector<4x192xf32>
    %386 = arith.addf %384, %385 : vector<4x192xf32>
    %387 = vector.extract_strided_slice %386 {offsets = [0, 0], sizes = [2, 96], strides = [1, 1]} : vector<4x192xf32> to vector<2x96xf32>
    %388 = vector.extract_strided_slice %386 {offsets = [2, 96], sizes = [2, 96], strides = [1, 1]} : vector<4x192xf32> to vector<2x96xf32>
    %389 = tpu.concatenate %387, %388 in 0 : vector<2x96xf32>, vector<2x96xf32> -> vector<4x96xf32>
    %390 = arith.index_cast %c7_i32_123 : i32 to index
    %c0_128 = arith.constant 0 : index
    %c0_129 = arith.constant 0 : index
    %391 = vector.load %arg0[%390, %c0_128, %c0_129] : memref<8x2x192xf32, #tpu.memory_space<vmem>>, vector<1x2x192xf32>
    %392 = vector.shape_cast %391 : vector<1x2x192xf32> to vector<2x192xf32>
    %393 = vector.extract_strided_slice %392 {offsets = [0, 0], sizes = [2, 96], strides = [1, 1]} : vector<2x192xf32> to vector<2x96xf32>
    %394 = arith.index_cast %382 : i32 to index
    %c0_130 = arith.constant 0 : index
    %c0_131 = arith.constant 0 : index
    %395 = vector.load %arg0[%394, %c0_130, %c0_131] : memref<8x2x192xf32, #tpu.memory_space<vmem>>, vector<1x2x192xf32>
    %396 = vector.shape_cast %395 : vector<1x2x192xf32> to vector<2x192xf32>
    %397 = vector.extract_strided_slice %396 {offsets = [0, 96], sizes = [2, 96], strides = [1, 1]} : vector<2x192xf32> to vector<2x96xf32>
    %398 = tpu.concatenate %393, %397 in 0 : vector<2x96xf32>, vector<2x96xf32> -> vector<4x96xf32>
    %399 = vector.extract_strided_slice %398 {offsets = [0, 0], sizes = [4, 32], strides = [1, 1]} : vector<4x96xf32> to vector<4x32xf32>
    %400 = vector.extract_strided_slice %389 {offsets = [0, 0], sizes = [4, 32], strides = [1, 1]} : vector<4x96xf32> to vector<4x32xf32>
    %401 = arith.addf %399, %400 : vector<4x32xf32>
    %402 = arith.negf %401 : vector<4x32xf32>
    %403 = math.exp %402 : vector<4x32xf32>
    %cst_132 = arith.constant 1.000000e+00 : f32
    %404 = vector.broadcast %cst_132 : f32 to vector<4x32xf32>
    %405 = arith.addf %404, %403 : vector<4x32xf32>
    %406 = arith.divf %404, %405 : vector<4x32xf32>
    %407 = vector.extract_strided_slice %398 {offsets = [0, 32], sizes = [4, 32], strides = [1, 1]} : vector<4x96xf32> to vector<4x32xf32>
    %408 = vector.extract_strided_slice %389 {offsets = [0, 32], sizes = [4, 32], strides = [1, 1]} : vector<4x96xf32> to vector<4x32xf32>
    %409 = arith.addf %407, %408 : vector<4x32xf32>
    %410 = arith.negf %409 : vector<4x32xf32>
    %411 = math.exp %410 : vector<4x32xf32>
    %cst_133 = arith.constant 1.000000e+00 : f32
    %412 = vector.broadcast %cst_133 : f32 to vector<4x32xf32>
    %413 = arith.addf %412, %411 : vector<4x32xf32>
    %414 = arith.divf %412, %413 : vector<4x32xf32>
    %415 = vector.extract_strided_slice %398 {offsets = [0, 64], sizes = [4, 32], strides = [1, 1]} : vector<4x96xf32> to vector<4x32xf32>
    %416 = vector.extract_strided_slice %389 {offsets = [0, 64], sizes = [4, 32], strides = [1, 1]} : vector<4x96xf32> to vector<4x32xf32>
    %417 = arith.mulf %406, %416 : vector<4x32xf32>
    %418 = arith.addf %415, %417 : vector<4x32xf32>
    %419 = math.tanh %418 : vector<4x32xf32>
    %cst_134 = arith.constant 1.000000e+00 : f32
    %420 = vector.broadcast %cst_134 : f32 to vector<4x32xf32>
    %421 = arith.subf %420, %414 : vector<4x32xf32>
    %422 = arith.mulf %421, %419 : vector<4x32xf32>
    %423 = arith.mulf %414, %383 : vector<4x32xf32>
    %424 = arith.addf %422, %423 : vector<4x32xf32>
    %c0_135 = arith.constant 0 : index
    %c0_136 = arith.constant 0 : index
    %425 = vector.load %arg5[%c0_135, %c0_136] : memref<4x32xf32, #tpu.memory_space<vmem>>, vector<4x32xf32>
    tpu.vector_store %arg5[%c0_135, %c0_136], %424 {strides = array<i32>} : memref<4x32xf32, #tpu.memory_space<vmem>>, vector<4x32xf32>,
    %426 = vector.extract_strided_slice %424 {offsets = [0, 0], sizes = [2, 32], strides = [1, 1]} : vector<4x32xf32> to vector<2x32xf32>
    %427 = arith.index_cast %c7_i32_123 : i32 to index
    %c0_137 = arith.constant 0 : index
    %c0_138 = arith.constant 0 : index
    %428 = vector.load %arg6[%427, %c0_137, %c0_138] : memref<8x2x32xf32, #tpu.memory_space<vmem>>, vector<1x2x32xf32>
    %429 = vector.shape_cast %428 : vector<1x2x32xf32> to vector<2x32xf32>
    %430 = vector.shape_cast %426 : vector<2x32xf32> to vector<1x2x32xf32>
    tpu.vector_store %arg6[%427, %c0_137, %c0_138], %430 {strides = array<i32>} : memref<8x2x32xf32, #tpu.memory_space<vmem>>, vector<1x2x32xf32>,
    %431 = vector.extract_strided_slice %424 {offsets = [2, 0], sizes = [2, 32], strides = [1, 1]} : vector<4x32xf32> to vector<2x32xf32>
    %432 = arith.index_cast %382 : i32 to index
    %c0_139 = arith.constant 0 : index
    %c0_140 = arith.constant 0 : index
    %433 = vector.load %arg7[%432, %c0_139, %c0_140] : memref<8x2x32xf32, #tpu.memory_space<vmem>>, vector<1x2x32xf32>
    %434 = vector.shape_cast %433 : vector<1x2x32xf32> to vector<2x32xf32>
    %435 = vector.shape_cast %431 : vector<2x32xf32> to vector<1x2x32xf32>
    tpu.vector_store %arg7[%432, %c0_139, %c0_140], %435 {strides = array<i32>} : memref<8x2x32xf32, #tpu.memory_space<vmem>>, vector<1x2x32xf32>,
    %c8_i32 = arith.constant 8 : i32
    %c0_141 = arith.constant 0 : index
    %c0_142 = arith.constant 0 : index
    %c0_143 = arith.constant 0 : index
    %436 = vector.load %arg6[%c0_141, %c0_142, %c0_143] : memref<8x2x32xf32, #tpu.memory_space<vmem>>, vector<8x2x32xf32>
    %c0_144 = arith.constant 0 : index
    %c0_145 = arith.constant 0 : index
    %c0_146 = arith.constant 0 : index
    %437 = vector.load %arg7[%c0_144, %c0_145, %c0_146] : memref<8x2x32xf32, #tpu.memory_space<vmem>>, vector<8x2x32xf32>
    %438 = tpu.concatenate %436, %437 in 2 : vector<8x2x32xf32>, vector<8x2x32xf32> -> vector<8x2x64xf32>
    %c0_147 = arith.constant 0 : index
    %c0_148 = arith.constant 0 : index
    %c0_149 = arith.constant 0 : index
    %439 = vector.load %arg3[%c0_147, %c0_148, %c0_149] : memref<8x2x64xf32, #tpu.memory_space<vmem>>, vector<8x2x64xf32>
    tpu.vector_store %arg3[%c0_147, %c0_148, %c0_149], %438 {strides = array<i32>} : memref<8x2x64xf32, #tpu.memory_space<vmem>>, vector<8x2x64xf32>,
    %c0_150 = arith.constant 0 : index
    %c0_151 = arith.constant 0 : index
    %440 = vector.load %arg5[%c0_150, %c0_151] : memref<4x32xf32, #tpu.memory_space<vmem>>, vector<4x32xf32>
    %441 = vector.extract_strided_slice %440 {offsets = [0, 0], sizes = [2, 32], strides = [1, 1]} : vector<4x32xf32> to vector<2x32xf32>
    %c0_152 = arith.constant 0 : index
    %c0_153 = arith.constant 0 : index
    %c0_154 = arith.constant 0 : index
    %442 = vector.load %arg4[%c0_152, %c0_153, %c0_154] : memref<2x2x32xf32, #tpu.memory_space<vmem>>, vector<1x2x32xf32>
    %443 = vector.shape_cast %442 : vector<1x2x32xf32> to vector<2x32xf32>
    %444 = vector.shape_cast %441 : vector<2x32xf32> to vector<1x2x32xf32>
    tpu.vector_store %arg4[%c0_152, %c0_153, %c0_154], %444 {strides = array<i32>} : memref<2x2x32xf32, #tpu.memory_space<vmem>>, vector<1x2x32xf32>,
    %445 = vector.extract_strided_slice %440 {offsets = [2, 0], sizes = [2, 32], strides = [1, 1]} : vector<4x32xf32> to vector<2x32xf32>
    %c1 = arith.constant 1 : index
    %c0_155 = arith.constant 0 : index
    %c0_156 = arith.constant 0 : index
    %446 = vector.load %arg4[%c1, %c0_155, %c0_156] : memref<2x2x32xf32, #tpu.memory_space<vmem>>, vector<1x2x32xf32>
    %447 = vector.shape_cast %446 : vector<1x2x32xf32> to vector<2x32xf32>
    %448 = vector.shape_cast %445 : vector<2x32xf32> to vector<1x2x32xf32>
    tpu.vector_store %arg4[%c1, %c0_155, %c0_156], %448 {strides = array<i32>} : memref<2x2x32xf32, #tpu.memory_space<vmem>>, vector<1x2x32xf32>,
    return
  }
}

</mosaic_0001>

<llo_original>
// kernel: encoder_forward.6
$region0: #{encoder_forward.6}
  #allocation0 [shape = 'u32[]', space=smem, size = 0x4, offset = 0x4, fixed_abs, tag = 'smem constant byte address 0x4 - core index']
  #allocation1 [shape = 'u32[144,128]{1,0:T(1,128)}', space=vmem, size = 0x12000, scoped, tag = 'internal scratch']
  %s0 = inlined_call_operand.vmem [shape: f32[16,64], index: 0, kind: input, shape index: {}]
  %s1 = inlined_call_operand.vmem [shape: f32[64,192], index: 1, kind: input, shape index: {}]
  %s2 = inlined_call_operand.vmem [shape: f32[1,192], index: 2, kind: input, shape index: {}]
  %s3 = inlined_call_operand.vmem [shape: f32[16,192], index: 3, kind: output, shape index: {}]
  %s4 = sld [smem:[#allocation0]]
  $region22: #{encoder_forward.6} parent=0
    _
  %s6 = ssub.s32 1, %s4
  %s7 = scalar_select 0, %s6, %s4
  // Predicated region
  $region2: #{encoder_forward.6} parent=0 // pred_check
    _
  $region3: #{encoder_forward.6} parent=0 // pred_check_branch
    %9 = sbr.rel (0) target = $region5
  $region4: #{encoder_forward.6} parent=0 // pred_region
    _
  $region5: #{encoder_forward.6} parent=0 // pred_fallthru
    _
  // Predicated region
  $region6: #{encoder_forward.6} parent=0 // pred_check
    _
  $region7: #{encoder_forward.6} parent=0 // pred_check_branch
    %11 = sbr.rel (0) target = $region9
  $region8: #{encoder_forward.6} parent=0 // pred_region
    _
  $region9: #{encoder_forward.6} parent=0 // pred_fallthru
    _
  // Predicated region
  $region10: #{encoder_forward.6} parent=0 // pred_check
    _
  $region11: #{encoder_forward.6} parent=0 // pred_check_branch
    %13 = sbr.rel (0) target = $region13
  $region12: #{encoder_forward.6} parent=0 // pred_region
    _
  $region13: #{encoder_forward.6} parent=0 // pred_fallthru
    _
  %v14 = vld [vmem:[%s0] sm:$0xff]
  %v15 = vld [vmem:[%s0 + $0x8] sm:$0xff]
  %v16 = vld [vmem:[%s1] sm:$0xff]
  %v17 = vld [vmem:[%s1 + $0x8] sm:$0xff]
  %v18 = vld [vmem:[%s1 + $0x10] sm:$0xff]
  %v19 = vld [vmem:[%s1 + $0x18] sm:$0xff]
  %v20 = vld [vmem:[%s1 + $0x20] sm:$0xff]
  %v21 = vld [vmem:[%s1 + $0x28] sm:$0xff]
  %v22 = vld [vmem:[%s1 + $0x30] sm:$0xff]
  %v23 = vld [vmem:[%s1 + $0x38] sm:$0xff]
  %v24 = vld [vmem:[%s1 + $0x40] sm:$0xff]
  %v25 = vld [vmem:[%s1 + $0x48] sm:$0xff]
  %v26 = vld [vmem:[%s1 + $0x50] sm:$0xff]
  %v27 = vld [vmem:[%s1 + $0x58] sm:$0xff]
  %v28 = vld [vmem:[%s1 + $0x60] sm:$0xff]
  %v29 = vld [vmem:[%s1 + $0x68] sm:$0xff]
  %v30 = vld [vmem:[%s1 + $0x70] sm:$0xff]
  %v31 = vld [vmem:[%s1 + $0x78] sm:$0xff]
  %v32 = vld [vmem:[%s2] sm:$0x3]
  %v34 = vlaneseq
  %v35 = vshrl.u32 %v34, 7
  %v36 = vsub.s32 0, %v35
  %v37 = vrot.slane %v32, %v36
  %v38 = vlaneseq
  %v39 = vshrl.u32 %v38, 7
  %v40 = vsub.s32 1, %v39
  %v41 = vrot.slane %v32, %v40
  %vm44 = vcmask 523264
  %v46 = vsel %vm44, %v14, 0
  %v49 = vsel %vm44, %v15, 0
  %51 = vmatprep.subr.mxu0 %v17
  %52 = vmatpush1.msra.mxu0 %v16
  %53 = vmatprep.subr.mxu0 %v19
  %54 = vmatpush1.msra.mxu0 %v18
  %55 = vmatprep.subr.mxu0 %v21
  %56 = vmatpush1.msra.mxu0 %v20
  %57 = vmatprep.subr.mxu0 %v23
  %58 = vmatpush1.msra.mxu0 %v22
  %59 = vmatprep.subr.mxu0 %v25
  %60 = vmatpush1.msra.mxu0 %v24
  %61 = vmatprep.subr.mxu0 %v27
  %62 = vmatpush1.msra.mxu0 %v26
  %63 = vmatprep.subr.mxu0 %v29
  %64 = vmatpush1.msra.mxu0 %v28
  %65 = vmatprep.subr.mxu0 %v31
  %66 = vmatpush1.msra.mxu0 %v30
  %67 = vmatprep.subr.mxu0 0.0
  %68 = vmatpush1.msra.mxu0 0.0
  %69 = vmatprep.subr.mxu0 0.0
  %70 = vmatpush1.msra.mxu0 0.0
  %71 = vmatprep.subr.mxu0 0.0
  %72 = vmatpush1.msra.mxu0 0.0
  %73 = vmatprep.subr.mxu0 0.0
  %74 = vmatpush1.msra.mxu0 0.0
  %75 = vmatprep.subr.mxu0 0.0
  %76 = vmatpush1.msra.mxu0 0.0
  %77 = vmatprep.subr.mxu0 0.0
  %78 = vmatpush1.msra.mxu0 0.0
  %79 = vmatprep.subr.mxu0 0.0
  %80 = vmatpush1.msra.mxu0 0.0
  %81 = vmatprep.subr.mxu0 0.0
  %82 = vmatpush1.msra.mxu0 0.0
  %83 = vmatprep.subr.mxu0 0.0
  %84 = vmatpush1.msra.mxu0 0.0
  %85 = vmatprep.subr.mxu0 0.0
  %86 = vmatpush1.msra.mxu0 0.0
  %87 = vmatprep.subr.mxu0 0.0
  %88 = vmatpush1.msra.mxu0 0.0
  %89 = vmatprep.subr.mxu0 0.0
  %90 = vmatpush1.msra.mxu0 0.0
  %91 = vmatprep.subr.mxu0 0.0
  %92 = vmatpush1.msra.mxu0 0.0
  %93 = vmatprep.subr.mxu0 0.0
  %94 = vmatpush1.msra.mxu0 0.0
  %95 = vmatprep.subr.mxu0 0.0
  %96 = vmatpush1.msra.mxu0 0.0
  %97 = vmatprep.subr.mxu0 0.0
  %98 = vmatpush1.msra.mxu0 0.0
  %99 = vmatprep.subr.mxu0 0.0
  %100 = vmatpush1.msra.mxu0 0.0
  %101 = vmatprep.subr.mxu0 0.0
  %102 = vmatpush1.msra.mxu0 0.0
  %103 = vmatprep.subr.mxu0 0.0
  %104 = vmatpush1.msra.mxu0 0.0
  %105 = vmatprep.subr.mxu0 0.0
  %106 = vmatpush1.msra.mxu0 0.0
  %107 = vmatprep.subr.mxu0 0.0
  %108 = vmatpush1.msra.mxu0 0.0
  %109 = vmatprep.subr.mxu0 0.0
  %110 = vmatpush1.msra.mxu0 0.0
  %111 = vmatprep.subr.mxu0 0.0
  %112 = vmatpush1.msra.mxu0 0.0
  %113 = vmatprep.subr.mxu0 0.0
  %114 = vmatpush1.msra.mxu0 0.0
  %115 = vmatprep.mubr.f32.mxu0 0.0
  %116 = vmatmul.mubr.f32.gmra.mrb[0].mxu0 %v46
  %v117 = vpop.f32.mrb[0].mxu0
  %v118 = vadd.f32 %v37, %v117
  %v119 = vpop.f32.mrb[0].mxu0
  %v120 = vadd.f32 %v41, %v119
  %121 = vmatprep.mubr.f32.mxu0 0.0
  %122 = vmatmul.mubr.f32.gmra.mrb[0].mxu0 %v49
  %v123 = vpop.f32.mrb[0].mxu0
  %v124 = vadd.f32 %v37, %v123
  %v125 = vpop.f32.mrb[0].mxu0
  %v126 = vadd.f32 %v41, %v125
  %127 = vdwg.mxu0
  %128 = vst [vmem:[%s3] sm:$0xff] %v118
  %129 = vst.msk [vmem:[%s3 + $0x8] sm:$0xff] %vm44, %v120
  %130 = vst [vmem:[%s3 + $0x10] sm:$0xff] %v124
  %131 = vst.msk [vmem:[%s3 + $0x18] sm:$0xff] %vm44, %v126
  // Predicated region
  $region14: #{encoder_forward.6} parent=0 // pred_check
    _
  $region15: #{encoder_forward.6} parent=0 // pred_check_branch
    %133 = sbr.rel (0) target = $region17
  $region16: #{encoder_forward.6} parent=0 // pred_region
    _
  $region17: #{encoder_forward.6} parent=0 // pred_fallthru
    _
  // Predicated region
  $region18: #{encoder_forward.6} parent=0 // pred_check
    _
  $region19: #{encoder_forward.6} parent=0 // pred_check_branch
    %135 = sbr.rel (0) target = $region21
  $region20: #{encoder_forward.6} parent=0 // pred_region
    _
  $region21: #{encoder_forward.6} parent=0 // pred_fallthru
    _

// kernel: encoder_forward.4
$region0: #{encoder_forward.4}
  #allocation0 [shape = 'u32[]', space=smem, size = 0x4, offset = 0x4, fixed_abs, tag = 'smem constant byte address 0x4 - core index']
  #allocation1 [shape = 'u32[144,128]{1,0:T(1,128)}', space=vmem, size = 0x12000, scoped, tag = 'internal scratch']
  %s0 = inlined_call_operand.vmem [shape: f32[16,16], index: 0, kind: input, shape index: {}]
  %s1 = inlined_call_operand.vmem [shape: f32[16,192], index: 1, kind: input, shape index: {}]
  %s2 = inlined_call_operand.vmem [shape: f32[1,192], index: 2, kind: input, shape index: {}]
  %s3 = inlined_call_operand.vmem [shape: f32[16,192], index: 3, kind: output, shape index: {}]
  %s4 = sld [smem:[#allocation0]]
  $region22: #{encoder_forward.4} parent=0
    _
  %s6 = ssub.s32 1, %s4
  %s7 = scalar_select 0, %s6, %s4
  // Predicated region
  $region2: #{encoder_forward.4} parent=0 // pred_check
    _
  $region3: #{encoder_forward.4} parent=0 // pred_check_branch
    %9 = sbr.rel (0) target = $region5
  $region4: #{encoder_forward.4} parent=0 // pred_region
    _
  $region5: #{encoder_forward.4} parent=0 // pred_fallthru
    _
  // Predicated region
  $region6: #{encoder_forward.4} parent=0 // pred_check
    _
  $region7: #{encoder_forward.4} parent=0 // pred_check_branch
    %11 = sbr.rel (0) target = $region9
  $region8: #{encoder_forward.4} parent=0 // pred_region
    _
  $region9: #{encoder_forward.4} parent=0 // pred_fallthru
    _
  // Predicated region
  $region10: #{encoder_forward.4} parent=0 // pred_check
    _
  $region11: #{encoder_forward.4} parent=0 // pred_check_branch
    %13 = sbr.rel (0) target = $region13
  $region12: #{encoder_forward.4} parent=0 // pred_region
    _
  $region13: #{encoder_forward.4} parent=0 // pred_fallthru
    _
  %v14 = vld [vmem:[%s0] sm:$0xff]
  %v15 = vld [vmem:[%s0 + $0x8] sm:$0xff]
  %v16 = vld [vmem:[%s1] sm:$0xff]
  %v17 = vld [vmem:[%s1 + $0x8] sm:$0xff]
  %v18 = vld [vmem:[%s1 + $0x10] sm:$0xff]
  %v19 = vld [vmem:[%s1 + $0x18] sm:$0xff]
  %v20 = vld [vmem:[%s2] sm:$0x3]
  %v22 = vlaneseq
  %v23 = vshrl.u32 %v22, 7
  %v24 = vsub.s32 0, %v23
  %v25 = vrot.slane %v20, %v24
  %v26 = vlaneseq
  %v27 = vshrl.u32 %v26, 7
  %v28 = vsub.s32 1, %v27
  %v29 = vrot.slane %v20, %v28
  %vm32 = vcmask 130048
  %v34 = vsel %vm32, %v14, 0
  %v37 = vsel %vm32, %v15, 0
  %39 = vmatprep.subr.mxu0 %v17
  %40 = vmatpush1.msra.mxu0 %v16
  %41 = vmatprep.subr.mxu0 %v19
  %42 = vmatpush1.msra.mxu0 %v18
  %43 = vmatprep.subr.mxu0 0.0
  %44 = vmatpush1.msra.mxu0 0.0
  %45 = vmatprep.subr.mxu0 0.0
  %46 = vmatpush1.msra.mxu0 0.0
  %47 = vmatprep.subr.mxu0 0.0
  %48 = vmatpush1.msra.mxu0 0.0
  %49 = vmatprep.subr.mxu0 0.0
  %50 = vmatpush1.msra.mxu0 0.0
  %51 = vmatprep.subr.mxu0 0.0
  %52 = vmatpush1.msra.mxu0 0.0
  %53 = vmatprep.subr.mxu0 0.0
  %54 = vmatpush1.msra.mxu0 0.0
  %55 = vmatprep.subr.mxu0 0.0
  %56 = vmatpush1.msra.mxu0 0.0
  %57 = vmatprep.subr.mxu0 0.0
  %58 = vmatpush1.msra.mxu0 0.0
  %59 = vmatprep.subr.mxu0 0.0
  %60 = vmatpush1.msra.mxu0 0.0
  %61 = vmatprep.subr.mxu0 0.0
  %62 = vmatpush1.msra.mxu0 0.0
  %63 = vmatprep.subr.mxu0 0.0
  %64 = vmatpush1.msra.mxu0 0.0
  %65 = vmatprep.subr.mxu0 0.0
  %66 = vmatpush1.msra.mxu0 0.0
  %67 = vmatprep.subr.mxu0 0.0
  %68 = vmatpush1.msra.mxu0 0.0
  %69 = vmatprep.subr.mxu0 0.0
  %70 = vmatpush1.msra.mxu0 0.0
  %71 = vmatprep.subr.mxu0 0.0
  %72 = vmatpush1.msra.mxu0 0.0
  %73 = vmatprep.subr.mxu0 0.0
  %74 = vmatpush1.msra.mxu0 0.0
  %75 = vmatprep.subr.mxu0 0.0
  %76 = vmatpush1.msra.mxu0 0.0
  %77 = vmatprep.subr.mxu0 0.0
  %78 = vmatpush1.msra.mxu0 0.0
  %79 = vmatprep.subr.mxu0 0.0
  %80 = vmatpush1.msra.mxu0 0.0
  %81 = vmatprep.subr.mxu0 0.0
  %82 = vmatpush1.msra.mxu0 0.0
  %83 = vmatprep.subr.mxu0 0.0
  %84 = vmatpush1.msra.mxu0 0.0
  %85 = vmatprep.subr.mxu0 0.0
  %86 = vmatpush1.msra.mxu0 0.0
  %87 = vmatprep.subr.mxu0 0.0
  %88 = vmatpush1.msra.mxu0 0.0
  %89 = vmatprep.subr.mxu0 0.0
  %90 = vmatpush1.msra.mxu0 0.0
  %91 = vmatprep.subr.mxu0 0.0
  %92 = vmatpush1.msra.mxu0 0.0
  %93 = vmatprep.subr.mxu0 0.0
  %94 = vmatpush1.msra.mxu0 0.0
  %95 = vmatprep.subr.mxu0 0.0
  %96 = vmatpush1.msra.mxu0 0.0
  %97 = vmatprep.subr.mxu0 0.0
  %98 = vmatpush1.msra.mxu0 0.0
  %99 = vmatprep.subr.mxu0 0.0
  %100 = vmatpush1.msra.mxu0 0.0
  %101 = vmatprep.subr.mxu0 0.0
  %102 = vmatpush1.msra.mxu0 0.0
  %103 = vmatprep.mubr.f32.mxu0 0.0
  %104 = vmatmul.mubr.f32.gmra.mrb[0].mxu0 %v34
  %v105 = vpop.f32.mrb[0].mxu0
  %v106 = vadd.f32 %v25, %v105
  %v107 = vpop.f32.mrb[0].mxu0
  %v108 = vadd.f32 %v29, %v107
  %109 = vmatprep.mubr.f32.mxu0 0.0
  %110 = vmatmul.mubr.f32.gmra.mrb[0].mxu0 %v37
  %v111 = vpop.f32.mrb[0].mxu0
  %v112 = vadd.f32 %v25, %v111
  %v113 = vpop.f32.mrb[0].mxu0
  %v114 = vadd.f32 %v29, %v113
  %115 = vdwg.mxu0
  %116 = vst [vmem:[%s3] sm:$0xff] %v106
  %vm117 = vcmask 523264
  %118 = vst.msk [vmem:[%s3 + $0x8] sm:$0xff] %vm117, %v108
  %119 = vst [vmem:[%s3 + $0x10] sm:$0xff] %v112
  %120 = vst.msk [vmem:[%s3 + $0x18] sm:$0xff] %vm117, %v114
  // Predicated region
  $region14: #{encoder_forward.4} parent=0 // pred_check
    _
  $region15: #{encoder_forward.4} parent=0 // pred_check_branch
    %122 = sbr.rel (0) target = $region17
  $region16: #{encoder_forward.4} parent=0 // pred_region
    _
  $region17: #{encoder_forward.4} parent=0 // pred_fallthru
    _
  // Predicated region
  $region18: #{encoder_forward.4} parent=0 // pred_check
    _
  $region19: #{encoder_forward.4} parent=0 // pred_check_branch
    %124 = sbr.rel (0) target = $region21
  $region20: #{encoder_forward.4} parent=0 // pred_region
    _
  $region21: #{encoder_forward.4} parent=0 // pred_fallthru
    _

// kernel: encoder_forward.5
$region0: #{encoder_forward.5}
  #allocation0 [shape = 'u32[]', space=smem, size = 0x4, offset = 0x4, fixed_abs, tag = 'smem constant byte address 0x4 - core index']
  #allocation1 [shape = 'u32[144,128]{1,0:T(1,128)}', space=vmem, size = 0x12000, scoped, tag = 'internal scratch']
  #allocation2 [shape = 'f32[4,32]{1,0:T(4,128)}', space=vmem, size = 0x800, scoped, tag = 'scratch operand']
  #allocation3 [shape = 'f32[8,2,32]{2,1,0:T(2,128)}', space=vmem, size = 0x2000, scoped, tag = 'scratch operand']
  #allocation4 [shape = 'f32[8,2,32]{2,1,0:T(2,128)}', space=vmem, size = 0x2000, scoped, tag = 'scratch operand']
  %s0 = inlined_call_operand.vmem [shape: f32[8,2,192], index: 0, kind: input, shape index: {}]
  %s1 = inlined_call_operand.vmem [shape: f32[32,192], index: 1, kind: input, shape index: {}]
  %s2 = inlined_call_operand.vmem [shape: f32[1,192], index: 2, kind: input, shape index: {}]
  %s3 = inlined_call_operand.vmem [shape: f32[8,2,64], index: 3, kind: output, shape index: {0}]
  %s4 = inlined_call_operand.vmem [shape: f32[2,2,32], index: 4, kind: output, shape index: {1}]
  %5 = xla_tuple %s3, %s4
  %s6 = sld [smem:[#allocation0]]
  $region30: #{encoder_forward.5} parent=0
    _
  %s8 = ssub.s32 1, %s6
  %s9 = scalar_select 0, %s8, %s6
  // Predicated region
  $region2: #{encoder_forward.5} parent=0 // pred_check
    _
  $region3: #{encoder_forward.5} parent=0 // pred_check_branch
    %11 = sbr.rel (0) target = $region5
  $region4: #{encoder_forward.5} parent=0 // pred_region
    _
  $region5: #{encoder_forward.5} parent=0 // pred_fallthru
    _
  // Predicated region
  $region6: #{encoder_forward.5} parent=0 // pred_check
    _
  $region7: #{encoder_forward.5} parent=0 // pred_check_branch
    %13 = sbr.rel (0) target = $region9
  $region8: #{encoder_forward.5} parent=0 // pred_region
    _
  $region9: #{encoder_forward.5} parent=0 // pred_fallthru
    _
  // Predicated region
  $region10: #{encoder_forward.5} parent=0 // pred_check
    _
  $region11: #{encoder_forward.5} parent=0 // pred_check_branch
    %15 = sbr.rel (0) target = $region13
  $region12: #{encoder_forward.5} parent=0 // pred_region
    _
  $region13: #{encoder_forward.5} parent=0 // pred_fallthru
    _
  %vm16 = vcmask 257024
  %17 = vst.msk [vmem:[#allocation2] sm:$0xf] %vm16, 0.0
  %v18 = vld [vmem:[%s1] sm:$0xff]
  %v19 = vld [vmem:[%s1 + $0x8] sm:$0xff]
  %v20 = vld [vmem:[%s1 + $0x10] sm:$0xff]
  %v21 = vld [vmem:[%s1 + $0x18] sm:$0xff]
  %v22 = vld [vmem:[%s1 + $0x20] sm:$0xff]
  %v23 = vld [vmem:[%s1 + $0x28] sm:$0xff]
  %v24 = vld [vmem:[%s1 + $0x30] sm:$0xff]
  %v25 = vld [vmem:[%s1 + $0x38] sm:$0xff]
  %v26 = vld [vmem:[%s2] sm:$0x3]
  %v27 = vld [vmem:[#allocation2] sm:$0xf]
  %v29 = vlaneseq
  %v30 = vshrl.u32 %v29, 7
  %v31 = vsub.s32 0, %v30
  %v32 = vrot.slane %v26, %v31
  %v33 = vlaneseq
  %v34 = vshrl.u32 %v33, 7
  %v35 = vsub.s32 1, %v34
  %v36 = vrot.slane %v26, %v35
  %vm39 = vcmask 261120
  %v41 = vsel %vm39, %v27, 0
  %43 = vmatprep.subr.mxu0 %v19
  %44 = vmatpush1.msra.mxu0 %v18
  %45 = vmatprep.subr.mxu0 %v21
  %46 = vmatpush1.msra.mxu0 %v20
  %47 = vmatprep.subr.mxu0 %v23
  %48 = vmatpush1.msra.mxu0 %v22
  %49 = vmatprep.subr.mxu0 %v25
  %50 = vmatpush1.msra.mxu0 %v24
  %51 = vmatprep.subr.mxu0 0.0
  %52 = vmatpush1.msra.mxu0 0.0
  %53 = vmatprep.subr.mxu0 0.0
  %54 = vmatpush1.msra.mxu0 0.0
  %55 = vmatprep.subr.mxu0 0.0
  %56 = vmatpush1.msra.mxu0 0.0
  %57 = vmatprep.subr.mxu0 0.0
  %58 = vmatpush1.msra.mxu0 0.0
  %59 = vmatprep.subr.mxu0 0.0
  %60 = vmatpush1.msra.mxu0 0.0
  %61 = vmatprep.subr.mxu0 0.0
  %62 = vmatpush1.msra.mxu0 0.0
  %63 = vmatprep.subr.mxu0 0.0
  %64 = vmatpush1.msra.mxu0 0.0
  %65 = vmatprep.subr.mxu0 0.0
  %66 = vmatpush1.msra.mxu0 0.0
  %67 = vmatprep.subr.mxu0 0.0
  %68 = vmatpush1.msra.mxu0 0.0
  %69 = vmatprep.subr.mxu0 0.0
  %70 = vmatpush1.msra.mxu0 0.0
  %71 = vmatprep.subr.mxu0 0.0
  %72 = vmatpush1.msra.mxu0 0.0
  %73 = vmatprep.subr.mxu0 0.0
  %74 = vmatpush1.msra.mxu0 0.0
  %75 = vmatprep.subr.mxu0 0.0
  %76 = vmatpush1.msra.mxu0 0.0
  %77 = vmatprep.subr.mxu0 0.0
  %78 = vmatpush1.msra.mxu0 0.0
  %79 = vmatprep.subr.mxu0 0.0
  %80 = vmatpush1.msra.mxu0 0.0
  %81 = vmatprep.subr.mxu0 0.0
  %82 = vmatpush1.msra.mxu0 0.0
  %83 = vmatprep.subr.mxu0 0.0
  %84 = vmatpush1.msra.mxu0 0.0
  %85 = vmatprep.subr.mxu0 0.0
  %86 = vmatpush1.msra.mxu0 0.0
  %87 = vmatprep.subr.mxu0 0.0
  %88 = vmatpush1.msra.mxu0 0.0
  %89 = vmatprep.subr.mxu0 0.0
  %90 = vmatpush1.msra.mxu0 0.0
  %91 = vmatprep.subr.mxu0 0.0
  %92 = vmatpush1.msra.mxu0 0.0
  %93 = vmatprep.subr.mxu0 0.0
  %94 = vmatpush1.msra.mxu0 0.0
  %95 = vmatprep.subr.mxu0 0.0
  %96 = vmatpush1.msra.mxu0 0.0
  %97 = vmatprep.subr.mxu0 0.0
  %98 = vmatpush1.msra.mxu0 0.0
  %99 = vmatprep.subr.mxu0 0.0
  %100 = vmatpush1.msra.mxu0 0.0
  %101 = vmatprep.subr.mxu0 0.0
  %102 = vmatpush1.msra.mxu0 0.0
  %103 = vmatprep.subr.mxu0 0.0
  %104 = vmatpush1.msra.mxu0 0.0
  %105 = vmatprep.subr.mxu0 0.0
  %106 = vmatpush1.msra.mxu0 0.0
  %107 = vmatprep.mubr.f32.mxu0 0.0
  %108 = vmatmul.mubr.f32.gmra.mrb[0].mxu0 %v41
  %v109 = vpop.f32.mrb[0].mxu0
  %v110 = vadd.f32 %v32, %v109
  %v111 = vpop.f32.mrb[0].mxu0
  %v112 = vadd.f32 %v36, %v111
  %113 = vdwg.mxu0
  %116 = vrot.lane.b32.xlu0 %v110, 32
  %v117 = vpop.permute.xlu0 %116
  %118 = vrot.lane.b32.xlu0 %v112, 32
  %v119 = vpop.permute.xlu0 %118
  %v120 = vsel %vm39, %v117, %v119
  %vm122 = vcmask 1041408
  %v123 = vsel %vm122, %v110, %v120
  %v124 = vld [vmem:[%s0] sm:$0xf]
  %s125 = scalar_lea.vmem %s0, 28
  %v126 = vld [vmem:[%s125] sm:$0xf]
  %v128 = vcombine.low %v126, %v126
  %v130 = vunpack.c.l.s4 1983009808
  %v131 = vunpack.c.0.s8 %v130
  %v132 = vlaneseq
  %v133 = vshrl.u32 %v132, 7
  %v134 = vsub.s32 %v131, %v133
  %v135 = vrot.slane %v128, %v134
  %v136 = vcombine.high %v135, %v135
  %137 = vrot.lane.b32.xlu0 %v135, 32
  %v138 = vpop.permute.xlu0 %137
  %139 = vrot.lane.b32.xlu0 %v136, 32
  %v140 = vpop.permute.xlu0 %139
  %v141 = vsel %vm39, %v138, %v140
  %v143 = vsel %vm122, %v124, %v141
  %v144 = vadd.f32 %v143, %v123
  %v145 = vxor.u32 %v144, 2147483648
  %v146 = vmul.f32 %v145, 1.442695
  %v147 = vpow.pop %v146
  %v148 = vadd.f32 %v147, 1.0
  %v149 = vrcp.pop %v148
  %v150 = vmul.f32 1.0, %v149
  %152 = vrot.lane.b32.xlu0 %v123, 64
  %v153 = vpop.permute.xlu0 %152
  %v155 = vmul.f32 %v150, %v153
  %157 = vrot.lane.b32.xlu0 %v155, 64
  %v158 = vpop.permute.xlu0 %157
  %v160 = vadd.f32 %v143, %v158
  %v161 = vtanh.pop %v160
  %v162 = vsub.f32 1.0, %v150
  %164 = vrot.lane.b32.xlu0 %v161, 96
  %v165 = vpop.permute.xlu0 %164
  %v167 = vmul.f32 %v162, %v165
  %168 = vrot.lane.b32.xlu0 %v27, 32
  %v169 = vpop.permute.xlu0 %168
  %v171 = vmul.f32 %v150, %v169
  %v172 = vadd.f32 %v167, %v171
  %174 = vrot.lane.b32.xlu0 %v172, 96
  %v175 = vpop.permute.xlu0 %174
  %177 = vst.msk [vmem:[#allocation2] sm:$0xf] %vm16, %v175
  %vm178 = vcmask 254976
  %179 = vst.msk [vmem:[#allocation3] sm:$0x3] %vm178, %v175
  %s180 = scalar_lea.vmem [#allocation4], 14
  %vm181 = vcmask 257026
  %182 = vst.msk [vmem:[%s180 - $0x2] sm:$0xc] %vm181, %v175
  %v183 = vld [vmem:[#allocation2] sm:$0xf]
  %v185 = vsel %vm39, %v183, 0
  %187 = vmatprep.subr.mxu0 %v19
  %188 = vmatpush1.msra.mxu0 %v18
  %189 = vmatprep.subr.mxu0 %v21
  %190 = vmatpush1.msra.mxu0 %v20
  %191 = vmatprep.subr.mxu0 %v23
  %192 = vmatpush1.msra.mxu0 %v22
  %193 = vmatprep.subr.mxu0 %v25
  %194 = vmatpush1.msra.mxu0 %v24
  %195 = vmatprep.subr.mxu0 0.0
  %196 = vmatpush1.msra.mxu0 0.0
  %197 = vmatprep.subr.mxu0 0.0
  %198 = vmatpush1.msra.mxu0 0.0
  %199 = vmatprep.subr.mxu0 0.0
  %200 = vmatpush1.msra.mxu0 0.0
  %201 = vmatprep.subr.mxu0 0.0
  %202 = vmatpush1.msra.mxu0 0.0
  %203 = vmatprep.subr.mxu0 0.0
  %204 = vmatpush1.msra.mxu0 0.0
  %205 = vmatprep.subr.mxu0 0.0
  %206 = vmatpush1.msra.mxu0 0.0
  %207 = vmatprep.subr.mxu0 0.0
  %208 = vmatpush1.msra.mxu0 0.0
  %209 = vmatprep.subr.mxu0 0.0
  %210 = vmatpush1.msra.mxu0 0.0
  %211 = vmatprep.subr.mxu0 0.0
  %212 = vmatpush1.msra.mxu0 0.0
  %213 = vmatprep.subr.mxu0 0.0
  %214 = vmatpush1.msra.mxu0 0.0
  %215 = vmatprep.subr.mxu0 0.0
  %216 = vmatpush1.msra.mxu0 0.0
  %217 = vmatprep.subr.mxu0 0.0
  %218 = vmatpush1.msra.mxu0 0.0
  %219 = vmatprep.subr.mxu0 0.0
  %220 = vmatpush1.msra.mxu0 0.0
  %221 = vmatprep.subr.mxu0 0.0
  %222 = vmatpush1.msra.mxu0 0.0
  %223 = vmatprep.subr.mxu0 0.0
  %224 = vmatpush1.msra.mxu0 0.0
  %225 = vmatprep.subr.mxu0 0.0
  %226 = vmatpush1.msra.mxu0 0.0
  %227 = vmatprep.subr.mxu0 0.0
  %228 = vmatpush1.msra.mxu0 0.0
  %229 = vmatprep.subr.mxu0 0.0
  %230 = vmatpush1.msra.mxu0 0.0
  %231 = vmatprep.subr.mxu0 0.0
  %232 = vmatpush1.msra.mxu0 0.0
  %233 = vmatprep.subr.mxu0 0.0
  %234 = vmatpush1.msra.mxu0 0.0
  %235 = vmatprep.subr.mxu0 0.0
  %236 = vmatpush1.msra.mxu0 0.0
  %237 = vmatprep.subr.mxu0 0.0
  %238 = vmatpush1.msra.mxu0 0.0
  %239 = vmatprep.subr.mxu0 0.0
  %240 = vmatpush1.msra.mxu0 0.0
  %241 = vmatprep.subr.mxu0 0.0
  %242 = vmatpush1.msra.mxu0 0.0
  %243 = vmatprep.subr.mxu0 0.0
  %244 = vmatpush1.msra.mxu0 0.0
  %245 = vmatprep.subr.mxu0 0.0
  %246 = vmatpush1.msra.mxu0 0.0
  %247 = vmatprep.subr.mxu0 0.0
  %248 = vmatpush1.msra.mxu0 0.0
  %249 = vmatprep.subr.mxu0 0.0
  %250 = vmatpush1.msra.mxu0 0.0
  %251 = vmatprep.mubr.f32.mxu0 0.0
  %252 = vmatmul.mubr.f32.gmra.mrb[0].mxu0 %v185
  %v253 = vpop.f32.mrb[0].mxu0
  %v254 = vadd.f32 %v32, %v253
  %v255 = vpop.f32.mrb[0].mxu0
  %v256 = vadd.f32 %v36, %v255
  %257 = vdwg.mxu0
  %260 = vrot.lane.b32.xlu0 %v254, 32
  %v261 = vpop.permute.xlu0 %260
  %262 = vrot.lane.b32.xlu0 %v256, 32
  %v263 = vpop.permute.xlu0 %262
  %v264 = vsel %vm39, %v261, %v263
  %v266 = vsel %vm122, %v254, %v264
  %s267 = scalar_lea.vmem %s0, 4
  %v268 = vld [vmem:[%s267] sm:$0xf]
  %s269 = scalar_lea.vmem %s0, 24
  %v270 = vld [vmem:[%s269] sm:$0xf]
  %v272 = vcombine.low %v270, %v270
  %v274 = vunpack.c.l.s4 1983009808
  %v275 = vunpack.c.0.s8 %v274
  %v276 = vlaneseq
  %v277 = vshrl.u32 %v276, 7
  %v278 = vsub.s32 %v275, %v277
  %v279 = vrot.slane %v272, %v278
  %v280 = vcombine.high %v279, %v279
  %281 = vrot.lane.b32.xlu0 %v279, 32
  %v282 = vpop.permute.xlu0 %281
  %283 = vrot.lane.b32.xlu0 %v280, 32
  %v284 = vpop.permute.xlu0 %283
  %v285 = vsel %vm39, %v282, %v284
  %v287 = vsel %vm122, %v268, %v285
  %v288 = vadd.f32 %v287, %v266
  %v289 = vxor.u32 %v288, 2147483648
  %v290 = vmul.f32 %v289, 1.442695
  %v291 = vpow.pop %v290
  %v292 = vadd.f32 %v291, 1.0
  %v293 = vrcp.pop %v292
  %v294 = vmul.f32 1.0, %v293
  %296 = vrot.lane.b32.xlu0 %v266, 64
  %v297 = vpop.permute.xlu0 %296
  %v299 = vmul.f32 %v294, %v297
  %301 = vrot.lane.b32.xlu0 %v299, 64
  %v302 = vpop.permute.xlu0 %301
  %v304 = vadd.f32 %v287, %v302
  %v305 = vtanh.pop %v304
  %v306 = vsub.f32 1.0, %v294
  %308 = vrot.lane.b32.xlu0 %v305, 96
  %v309 = vpop.permute.xlu0 %308
  %v311 = vmul.f32 %v306, %v309
  %312 = vrot.lane.b32.xlu0 %v183, 32
  %v313 = vpop.permute.xlu0 %312
  %v315 = vmul.f32 %v294, %v313
  %v316 = vadd.f32 %v311, %v315
  %318 = vrot.lane.b32.xlu0 %v316, 96
  %v319 = vpop.permute.xlu0 %318
  %321 = vst.msk [vmem:[#allocation2] sm:$0xf] %vm16, %v319
  %s322 = scalar_lea.vmem [#allocation3], 2
  %323 = vst.msk [vmem:[%s322] sm:$0x3] %vm178, %v319
  %s324 = scalar_lea.vmem [#allocation4], 12
  %325 = vst.msk [vmem:[%s324 - $0x2] sm:$0xc] %vm181, %v319
  %v326 = vld [vmem:[#allocation2] sm:$0xf]
  %v328 = vsel %vm39, %v326, 0
  %330 = vmatprep.subr.mxu0 %v19
  %331 = vmatpush1.msra.mxu0 %v18
  %332 = vmatprep.subr.mxu0 %v21
  %333 = vmatpush1.msra.mxu0 %v20
  %334 = vmatprep.subr.mxu0 %v23
  %335 = vmatpush1.msra.mxu0 %v22
  %336 = vmatprep.subr.mxu0 %v25
  %337 = vmatpush1.msra.mxu0 %v24
  %338 = vmatprep.subr.mxu0 0.0
  %339 = vmatpush1.msra.mxu0 0.0
  %340 = vmatprep.subr.mxu0 0.0
  %341 = vmatpush1.msra.mxu0 0.0
  %342 = vmatprep.subr.mxu0 0.0
  %343 = vmatpush1.msra.mxu0 0.0
  %344 = vmatprep.subr.mxu0 0.0
  %345 = vmatpush1.msra.mxu0 0.0
  %346 = vmatprep.subr.mxu0 0.0
  %347 = vmatpush1.msra.mxu0 0.0
  %348 = vmatprep.subr.mxu0 0.0
  %349 = vmatpush1.msra.mxu0 0.0
  %350 = vmatprep.subr.mxu0 0.0
  %351 = vmatpush1.msra.mxu0 0.0
  %352 = vmatprep.subr.mxu0 0.0
  %353 = vmatpush1.msra.mxu0 0.0
  %354 = vmatprep.subr.mxu0 0.0
  %355 = vmatpush1.msra.mxu0 0.0
  %356 = vmatprep.subr.mxu0 0.0
  %357 = vmatpush1.msra.mxu0 0.0
  %358 = vmatprep.subr.mxu0 0.0
  %359 = vmatpush1.msra.mxu0 0.0
  %360 = vmatprep.subr.mxu0 0.0
  %361 = vmatpush1.msra.mxu0 0.0
  %362 = vmatprep.subr.mxu0 0.0
  %363 = vmatpush1.msra.mxu0 0.0
  %364 = vmatprep.subr.mxu0 0.0
  %365 = vmatpush1.msra.mxu0 0.0
  %366 = vmatprep.subr.mxu0 0.0
  %367 = vmatpush1.msra.mxu0 0.0
  %368 = vmatprep.subr.mxu0 0.0
  %369 = vmatpush1.msra.mxu0 0.0
  %370 = vmatprep.subr.mxu0 0.0
  %371 = vmatpush1.msra.mxu0 0.0
  %372 = vmatprep.subr.mxu0 0.0
  %373 = vmatpush1.msra.mxu0 0.0
  %374 = vmatprep.subr.mxu0 0.0
  %375 = vmatpush1.msra.mxu0 0.0
  %376 = vmatprep.subr.mxu0 0.0
  %377 = vmatpush1.msra.mxu0 0.0
  %378 = vmatprep.subr.mxu0 0.0
  %379 = vmatpush1.msra.mxu0 0.0
  %380 = vmatprep.subr.mxu0 0.0
  %381 = vmatpush1.msra.mxu0 0.0
  %382 = vmatprep.subr.mxu0 0.0
  %383 = vmatpush1.msra.mxu0 0.0
  %384 = vmatprep.subr.mxu0 0.0
  %385 = vmatpush1.msra.mxu0 0.0
  %386 = vmatprep.subr.mxu0 0.0
  %387 = vmatpush1.msra.mxu0 0.0
  %388 = vmatprep.subr.mxu0 0.0
  %389 = vmatpush1.msra.mxu0 0.0
  %390 = vmatprep.subr.mxu0 0.0
  %391 = vmatpush1.msra.mxu0 0.0
  %392 = vmatprep.subr.mxu0 0.0
  %393 = vmatpush1.msra.mxu0 0.0
  %394 = vmatprep.mubr.f32.mxu0 0.0
  %395 = vmatmul.mubr.f32.gmra.mrb[0].mxu0 %v328
  %v396 = vpop.f32.mrb[0].mxu0
  %v397 = vadd.f32 %v32, %v396
  %v398 = vpop.f32.mrb[0].mxu0
  %v399 = vadd.f32 %v36, %v398
  %400 = vdwg.mxu0
  %403 = vrot.lane.b32.xlu0 %v397, 32
  %v404 = vpop.permute.xlu0 %403
  %405 = vrot.lane.b32.xlu0 %v399, 32
  %v406 = vpop.permute.xlu0 %405
  %v407 = vsel %vm39, %v404, %v406
  %v409 = vsel %vm122, %v397, %v407
  %s410 = scalar_lea.vmem %s0, 8
  %v411 = vld [vmem:[%s410] sm:$0xf]
  %s412 = scalar_lea.vmem %s0, 20
  %v413 = vld [vmem:[%s412] sm:$0xf]
  %v415 = vcombine.low %v413, %v413
  %v417 = vunpack.c.l.s4 1983009808
  %v418 = vunpack.c.0.s8 %v417
  %v419 = vlaneseq
  %v420 = vshrl.u32 %v419, 7
  %v421 = vsub.s32 %v418, %v420
  %v422 = vrot.slane %v415, %v421
  %v423 = vcombine.high %v422, %v422
  %424 = vrot.lane.b32.xlu0 %v422, 32
  %v425 = vpop.permute.xlu0 %424
  %426 = vrot.lane.b32.xlu0 %v423, 32
  %v427 = vpop.permute.xlu0 %426
  %v428 = vsel %vm39, %v425, %v427
  %v430 = vsel %vm122, %v411, %v428
  %v431 = vadd.f32 %v430, %v409
  %v432 = vxor.u32 %v431, 2147483648
  %v433 = vmul.f32 %v432, 1.442695
  %v434 = vpow.pop %v433
  %v435 = vadd.f32 %v434, 1.0
  %v436 = vrcp.pop %v435
  %v437 = vmul.f32 1.0, %v436
  %439 = vrot.lane.b32.xlu0 %v409, 64
  %v440 = vpop.permute.xlu0 %439
  %v442 = vmul.f32 %v437, %v440
  %444 = vrot.lane.b32.xlu0 %v442, 64
  %v445 = vpop.permute.xlu0 %444
  %v447 = vadd.f32 %v430, %v445
  %v448 = vtanh.pop %v447
  %v449 = vsub.f32 1.0, %v437
  %451 = vrot.lane.b32.xlu0 %v448, 96
  %v452 = vpop.permute.xlu0 %451
  %v454 = vmul.f32 %v449, %v452
  %455 = vrot.lane.b32.xlu0 %v326, 32
  %v456 = vpop.permute.xlu0 %455
  %v458 = vmul.f32 %v437, %v456
  %v459 = vadd.f32 %v454, %v458
  %461 = vrot.lane.b32.xlu0 %v459, 96
  %v462 = vpop.permute.xlu0 %461
  %464 = vst.msk [vmem:[#allocation2] sm:$0xf] %vm16, %v462
  %s465 = scalar_lea.vmem [#allocation3], 4
  %466 = vst.msk [vmem:[%s465] sm:$0x3] %vm178, %v462
  %s467 = scalar_lea.vmem [#allocation4], 10
  %468 = vst.msk [vmem:[%s467 - $0x2] sm:$0xc] %vm181, %v462
  %v469 = vld [vmem:[#allocation2] sm:$0xf]
  %v471 = vsel %vm39, %v469, 0
  %473 = vmatprep.subr.mxu0 %v19
  %474 = vmatpush1.msra.mxu0 %v18
  %475 = vmatprep.subr.mxu0 %v21
  %476 = vmatpush1.msra.mxu0 %v20
  %477 = vmatprep.subr.mxu0 %v23
  %478 = vmatpush1.msra.mxu0 %v22
  %479 = vmatprep.subr.mxu0 %v25
  %480 = vmatpush1.msra.mxu0 %v24
  %481 = vmatprep.subr.mxu0 0.0
  %482 = vmatpush1.msra.mxu0 0.0
  %483 = vmatprep.subr.mxu0 0.0
  %484 = vmatpush1.msra.mxu0 0.0
  %485 = vmatprep.subr.mxu0 0.0
  %486 = vmatpush1.msra.mxu0 0.0
  %487 = vmatprep.subr.mxu0 0.0
  %488 = vmatpush1.msra.mxu0 0.0
  %489 = vmatprep.subr.mxu0 0.0
  %490 = vmatpush1.msra.mxu0 0.0
  %491 = vmatprep.subr.mxu0 0.0
  %492 = vmatpush1.msra.mxu0 0.0
  %493 = vmatprep.subr.mxu0 0.0
  %494 = vmatpush1.msra.mxu0 0.0
  %495 = vmatprep.subr.mxu0 0.0
  %496 = vmatpush1.msra.mxu0 0.0
  %497 = vmatprep.subr.mxu0 0.0
  %498 = vmatpush1.msra.mxu0 0.0
  %499 = vmatprep.subr.mxu0 0.0
  %500 = vmatpush1.msra.mxu0 0.0
  %501 = vmatprep.subr.mxu0 0.0
  %502 = vmatpush1.msra.mxu0 0.0
  %503 = vmatprep.subr.mxu0 0.0
  %504 = vmatpush1.msra.mxu0 0.0
  %505 = vmatprep.subr.mxu0 0.0
  %506 = vmatpush1.msra.mxu0 0.0
  %507 = vmatprep.subr.mxu0 0.0
  %508 = vmatpush1.msra.mxu0 0.0
  %509 = vmatprep.subr.mxu0 0.0
  %510 = vmatpush1.msra.mxu0 0.0
  %511 = vmatprep.subr.mxu0 0.0
  %512 = vmatpush1.msra.mxu0 0.0
  %513 = vmatprep.subr.mxu0 0.0
  %514 = vmatpush1.msra.mxu0 0.0
  %515 = vmatprep.subr.mxu0 0.0
  %516 = vmatpush1.msra.mxu0 0.0
  %517 = vmatprep.subr.mxu0 0.0
  %518 = vmatpush1.msra.mxu0 0.0
  %519 = vmatprep.subr.mxu0 0.0
  %520 = vmatpush1.msra.mxu0 0.0
  %521 = vmatprep.subr.mxu0 0.0
  %522 = vmatpush1.msra.mxu0 0.0
  %523 = vmatprep.subr.mxu0 0.0
  %524 = vmatpush1.msra.mxu0 0.0
  %525 = vmatprep.subr.mxu0 0.0
  %526 = vmatpush1.msra.mxu0 0.0
  %527 = vmatprep.subr.mxu0 0.0
  %528 = vmatpush1.msra.mxu0 0.0
  %529 = vmatprep.subr.mxu0 0.0
  %530 = vmatpush1.msra.mxu0 0.0
  %531 = vmatprep.subr.mxu0 0.0
  %532 = vmatpush1.msra.mxu0 0.0
  %533 = vmatprep.subr.mxu0 0.0
  %534 = vmatpush1.msra.mxu0 0.0
  %535 = vmatprep.subr.mxu0 0.0
  %536 = vmatpush1.msra.mxu0 0.0
  %537 = vmatprep.mubr.f32.mxu0 0.0
  %538 = vmatmul.mubr.f32.gmra.mrb[0].mxu0 %v471
  %v539 = vpop.f32.mrb[0].mxu0
  %v540 = vadd.f32 %v32, %v539
  %v541 = vpop.f32.mrb[0].mxu0
  %v542 = vadd.f32 %v36, %v541
  %543 = vdwg.mxu0
  %546 = vrot.lane.b32.xlu0 %v540, 32
  %v547 = vpop.permute.xlu0 %546
  %548 = vrot.lane.b32.xlu0 %v542, 32
  %v549 = vpop.permute.xlu0 %548
  %v550 = vsel %vm39, %v547, %v549
  %v552 = vsel %vm122, %v540, %v550
  %s553 = scalar_lea.vmem %s0, 12
  %v554 = vld [vmem:[%s553] sm:$0xf]
  %s555 = scalar_lea.vmem %s0, 16
  %v556 = vld [vmem:[%s555] sm:$0xf]
  %v558 = vcombine.low %v556, %v556
  %v560 = vunpack.c.l.s4 1983009808
  %v561 = vunpack.c.0.s8 %v560
  %v562 = vlaneseq
  %v563 = vshrl.u32 %v562, 7
  %v564 = vsub.s32 %v561, %v563
  %v565 = vrot.slane %v558, %v564
  %v566 = vcombine.high %v565, %v565
  %567 = vrot.lane.b32.xlu0 %v565, 32
  %v568 = vpop.permute.xlu0 %567
  %569 = vrot.lane.b32.xlu0 %v566, 32
  %v570 = vpop.permute.xlu0 %569
  %v571 = vsel %vm39, %v568, %v570
  %v573 = vsel %vm122, %v554, %v571
  %v574 = vadd.f32 %v573, %v552
  %v575 = vxor.u32 %v574, 2147483648
  %v576 = vmul.f32 %v575, 1.442695
  %v577 = vpow.pop %v576
  %v578 = vadd.f32 %v577, 1.0
  %v579 = vrcp.pop %v578
  %v580 = vmul.f32 1.0, %v579
  %582 = vrot.lane.b32.xlu0 %v552, 64
  %v583 = vpop.permute.xlu0 %582
  %v585 = vmul.f32 %v580, %v583
  %587 = vrot.lane.b32.xlu0 %v585, 64
  %v588 = vpop.permute.xlu0 %587
  %v590 = vadd.f32 %v573, %v588
  %v591 = vtanh.pop %v590
  %v592 = vsub.f32 1.0, %v580
  %594 = vrot.lane.b32.xlu0 %v591, 96
  %v595 = vpop.permute.xlu0 %594
  %v597 = vmul.f32 %v592, %v595
  %598 = vrot.lane.b32.xlu0 %v469, 32
  %v599 = vpop.permute.xlu0 %598
  %v601 = vmul.f32 %v580, %v599
  %v602 = vadd.f32 %v597, %v601
  %604 = vrot.lane.b32.xlu0 %v602, 96
  %v605 = vpop.permute.xlu0 %604
  %607 = vst.msk [vmem:[#allocation2] sm:$0xf] %vm16, %v605
  %s608 = scalar_lea.vmem [#allocation3], 6
  %609 = vst.msk [vmem:[%s608] sm:$0x3] %vm178, %v605
  %s610 = scalar_lea.vmem [#allocation4], 8
  %611 = vst.msk [vmem:[%s610 - $0x2] sm:$0xc] %vm181, %v605
  %v612 = vld [vmem:[#allocation2] sm:$0xf]
  %v614 = vsel %vm39, %v612, 0
  %616 = vmatprep.subr.mxu0 %v19
  %617 = vmatpush1.msra.mxu0 %v18
  %618 = vmatprep.subr.mxu0 %v21
  %619 = vmatpush1.msra.mxu0 %v20
  %620 = vmatprep.subr.mxu0 %v23
  %621 = vmatpush1.msra.mxu0 %v22
  %622 = vmatprep.subr.mxu0 %v25
  %623 = vmatpush1.msra.mxu0 %v24
  %624 = vmatprep.subr.mxu0 0.0
  %625 = vmatpush1.msra.mxu0 0.0
  %626 = vmatprep.subr.mxu0 0.0
  %627 = vmatpush1.msra.mxu0 0.0
  %628 = vmatprep.subr.mxu0 0.0
  %629 = vmatpush1.msra.mxu0 0.0
  %630 = vmatprep.subr.mxu0 0.0
  %631 = vmatpush1.msra.mxu0 0.0
  %632 = vmatprep.subr.mxu0 0.0
  %633 = vmatpush1.msra.mxu0 0.0
  %634 = vmatprep.subr.mxu0 0.0
  %635 = vmatpush1.msra.mxu0 0.0
  %636 = vmatprep.subr.mxu0 0.0
  %637 = vmatpush1.msra.mxu0 0.0
  %638 = vmatprep.subr.mxu0 0.0
  %639 = vmatpush1.msra.mxu0 0.0
  %640 = vmatprep.subr.mxu0 0.0
  %641 = vmatpush1.msra.mxu0 0.0
  %642 = vmatprep.subr.mxu0 0.0
  %643 = vmatpush1.msra.mxu0 0.0
  %644 = vmatprep.subr.mxu0 0.0
  %645 = vmatpush1.msra.mxu0 0.0
  %646 = vmatprep.subr.mxu0 0.0
  %647 = vmatpush1.msra.mxu0 0.0
  %648 = vmatprep.subr.mxu0 0.0
  %649 = vmatpush1.msra.mxu0 0.0
  %650 = vmatprep.subr.mxu0 0.0
  %651 = vmatpush1.msra.mxu0 0.0
  %652 = vmatprep.subr.mxu0 0.0
  %653 = vmatpush1.msra.mxu0 0.0
  %654 = vmatprep.subr.mxu0 0.0
  %655 = vmatpush1.msra.mxu0 0.0
  %656 = vmatprep.subr.mxu0 0.0
  %657 = vmatpush1.msra.mxu0 0.0
  %658 = vmatprep.subr.mxu0 0.0
  %659 = vmatpush1.msra.mxu0 0.0
  %660 = vmatprep.subr.mxu0 0.0
  %661 = vmatpush1.msra.mxu0 0.0
  %662 = vmatprep.subr.mxu0 0.0
  %663 = vmatpush1.msra.mxu0 0.0
  %664 = vmatprep.subr.mxu0 0.0
  %665 = vmatpush1.msra.mxu0 0.0
  %666 = vmatprep.subr.mxu0 0.0
  %667 = vmatpush1.msra.mxu0 0.0
  %668 = vmatprep.subr.mxu0 0.0
  %669 = vmatpush1.msra.mxu0 0.0
  %670 = vmatprep.subr.mxu0 0.0
  %671 = vmatpush1.msra.mxu0 0.0
  %672 = vmatprep.subr.mxu0 0.0
  %673 = vmatpush1.msra.mxu0 0.0
  %674 = vmatprep.subr.mxu0 0.0
  %675 = vmatpush1.msra.mxu0 0.0
  %676 = vmatprep.subr.mxu0 0.0
  %677 = vmatpush1.msra.mxu0 0.0
  %678 = vmatprep.subr.mxu0 0.0
  %679 = vmatpush1.msra.mxu0 0.0
  %680 = vmatprep.mubr.f32.mxu0 0.0
  %681 = vmatmul.mubr.f32.gmra.mrb[0].mxu0 %v614
  %v682 = vpop.f32.mrb[0].mxu0
  %v683 = vadd.f32 %v32, %v682
  %v684 = vpop.f32.mrb[0].mxu0
  %v685 = vadd.f32 %v36, %v684
  %686 = vdwg.mxu0
  %689 = vrot.lane.b32.xlu0 %v683, 32
  %v690 = vpop.permute.xlu0 %689
  %691 = vrot.lane.b32.xlu0 %v685, 32
  %v692 = vpop.permute.xlu0 %691
  %v693 = vsel %vm39, %v690, %v692
  %v695 = vsel %vm122, %v683, %v693
  %v696 = vld [vmem:[%s555] sm:$0xf]
  %v697 = vld [vmem:[%s553] sm:$0xf]
  %v699 = vcombine.low %v697, %v697
  %v701 = vunpack.c.l.s4 1983009808
  %v702 = vunpack.c.0.s8 %v701
  %v703 = vlaneseq
  %v704 = vshrl.u32 %v703, 7
  %v705 = vsub.s32 %v702, %v704
  %v706 = vrot.slane %v699, %v705
  %v707 = vcombine.high %v706, %v706
  %708 = vrot.lane.b32.xlu0 %v706, 32
  %v709 = vpop.permute.xlu0 %708
  %710 = vrot.lane.b32.xlu0 %v707, 32
  %v711 = vpop.permute.xlu0 %710
  %v712 = vsel %vm39, %v709, %v711
  %v714 = vsel %vm122, %v696, %v712
  %v715 = vadd.f32 %v714, %v695
  %v716 = vxor.u32 %v715, 2147483648
  %v717 = vmul.f32 %v716, 1.442695
  %v718 = vpow.pop %v717
  %v719 = vadd.f32 %v718, 1.0
  %v720 = vrcp.pop %v719
  %v721 = vmul.f32 1.0, %v720
  %723 = vrot.lane.b32.xlu0 %v695, 64
  %v724 = vpop.permute.xlu0 %723
  %v726 = vmul.f32 %v721, %v724
  %728 = vrot.lane.b32.xlu0 %v726, 64
  %v729 = vpop.permute.xlu0 %728
  %v731 = vadd.f32 %v714, %v729
  %v732 = vtanh.pop %v731
  %v733 = vsub.f32 1.0, %v721
  %735 = vrot.lane.b32.xlu0 %v732, 96
  %v736 = vpop.permute.xlu0 %735
  %v738 = vmul.f32 %v733, %v736
  %739 = vrot.lane.b32.xlu0 %v612, 32
  %v740 = vpop.permute.xlu0 %739
  %v742 = vmul.f32 %v721, %v740
  %v743 = vadd.f32 %v738, %v742
  %745 = vrot.lane.b32.xlu0 %v743, 96
  %v746 = vpop.permute.xlu0 %745
  %748 = vst.msk [vmem:[#allocation2] sm:$0xf] %vm16, %v746
  %s749 = scalar_lea.vmem [#allocation3], 8
  %750 = vst.msk [vmem:[%s749] sm:$0x3] %vm178, %v746
  %s751 = scalar_lea.vmem [#allocation4], 6
  %752 = vst.msk [vmem:[%s751 - $0x2] sm:$0xc] %vm181, %v746
  %v753 = vld [vmem:[#allocation2] sm:$0xf]
  %v755 = vsel %vm39, %v753, 0
  %757 = vmatprep.subr.mxu0 %v19
  %758 = vmatpush1.msra.mxu0 %v18
  %759 = vmatprep.subr.mxu0 %v21
  %760 = vmatpush1.msra.mxu0 %v20
  %761 = vmatprep.subr.mxu0 %v23
  %762 = vmatpush1.msra.mxu0 %v22
  %763 = vmatprep.subr.mxu0 %v25
  %764 = vmatpush1.msra.mxu0 %v24
  %765 = vmatprep.subr.mxu0 0.0
  %766 = vmatpush1.msra.mxu0 0.0
  %767 = vmatprep.subr.mxu0 0.0
  %768 = vmatpush1.msra.mxu0 0.0
  %769 = vmatprep.subr.mxu0 0.0
  %770 = vmatpush1.msra.mxu0 0.0
  %771 = vmatprep.subr.mxu0 0.0
  %772 = vmatpush1.msra.mxu0 0.0
  %773 = vmatprep.subr.mxu0 0.0
  %774 = vmatpush1.msra.mxu0 0.0
  %775 = vmatprep.subr.mxu0 0.0
  %776 = vmatpush1.msra.mxu0 0.0
  %777 = vmatprep.subr.mxu0 0.0
  %778 = vmatpush1.msra.mxu0 0.0
  %779 = vmatprep.subr.mxu0 0.0
  %780 = vmatpush1.msra.mxu0 0.0
  %781 = vmatprep.subr.mxu0 0.0
  %782 = vmatpush1.msra.mxu0 0.0
  %783 = vmatprep.subr.mxu0 0.0
  %784 = vmatpush1.msra.mxu0 0.0
  %785 = vmatprep.subr.mxu0 0.0
  %786 = vmatpush1.msra.mxu0 0.0
  %787 = vmatprep.subr.mxu0 0.0
  %788 = vmatpush1.msra.mxu0 0.0
  %789 = vmatprep.subr.mxu0 0.0
  %790 = vmatpush1.msra.mxu0 0.0
  %791 = vmatprep.subr.mxu0 0.0
  %792 = vmatpush1.msra.mxu0 0.0
  %793 = vmatprep.subr.mxu0 0.0
  %794 = vmatpush1.msra.mxu0 0.0
  %795 = vmatprep.subr.mxu0 0.0
  %796 = vmatpush1.msra.mxu0 0.0
  %797 = vmatprep.subr.mxu0 0.0
  %798 = vmatpush1.msra.mxu0 0.0
  %799 = vmatprep.subr.mxu0 0.0
  %800 = vmatpush1.msra.mxu0 0.0
  %801 = vmatprep.subr.mxu0 0.0
  %802 = vmatpush1.msra.mxu0 0.0
  %803 = vmatprep.subr.mxu0 0.0
  %804 = vmatpush1.msra.mxu0 0.0
  %805 = vmatprep.subr.mxu0 0.0
  %806 = vmatpush1.msra.mxu0 0.0
  %807 = vmatprep.subr.mxu0 0.0
  %808 = vmatpush1.msra.mxu0 0.0
  %809 = vmatprep.subr.mxu0 0.0
  %810 = vmatpush1.msra.mxu0 0.0
  %811 = vmatprep.subr.mxu0 0.0
  %812 = vmatpush1.msra.mxu0 0.0
  %813 = vmatprep.subr.mxu0 0.0
  %814 = vmatpush1.msra.mxu0 0.0
  %815 = vmatprep.subr.mxu0 0.0
  %816 = vmatpush1.msra.mxu0 0.0
  %817 = vmatprep.subr.mxu0 0.0
  %818 = vmatpush1.msra.mxu0 0.0
  %819 = vmatprep.subr.mxu0 0.0
  %820 = vmatpush1.msra.mxu0 0.0
  %821 = vmatprep.mubr.f32.mxu0 0.0
  %822 = vmatmul.mubr.f32.gmra.mrb[0].mxu0 %v755
  %v823 = vpop.f32.mrb[0].mxu0
  %v824 = vadd.f32 %v32, %v823
  %v825 = vpop.f32.mrb[0].mxu0
  %v826 = vadd.f32 %v36, %v825
  %827 = vdwg.mxu0
  %830 = vrot.lane.b32.xlu0 %v824, 32
  %v831 = vpop.permute.xlu0 %830
  %832 = vrot.lane.b32.xlu0 %v826, 32
  %v833 = vpop.permute.xlu0 %832
  %v834 = vsel %vm39, %v831, %v833
  %v836 = vsel %vm122, %v824, %v834
  %v837 = vld [vmem:[%s412] sm:$0xf]
  %v838 = vld [vmem:[%s410] sm:$0xf]
  %v840 = vcombine.low %v838, %v838
  %v842 = vunpack.c.l.s4 1983009808
  %v843 = vunpack.c.0.s8 %v842
  %v844 = vlaneseq
  %v845 = vshrl.u32 %v844, 7
  %v846 = vsub.s32 %v843, %v845
  %v847 = vrot.slane %v840, %v846
  %v848 = vcombine.high %v847, %v847
  %849 = vrot.lane.b32.xlu0 %v847, 32
  %v850 = vpop.permute.xlu0 %849
  %851 = vrot.lane.b32.xlu0 %v848, 32
  %v852 = vpop.permute.xlu0 %851
  %v853 = vsel %vm39, %v850, %v852
  %v855 = vsel %vm122, %v837, %v853
  %v856 = vadd.f32 %v855, %v836
  %v857 = vxor.u32 %v856, 2147483648
  %v858 = vmul.f32 %v857, 1.442695
  %v859 = vpow.pop %v858
  %v860 = vadd.f32 %v859, 1.0
  %v861 = vrcp.pop %v860
  %v862 = vmul.f32 1.0, %v861
  %864 = vrot.lane.b32.xlu0 %v836, 64
  %v865 = vpop.permute.xlu0 %864
  %v867 = vmul.f32 %v862, %v865
  %869 = vrot.lane.b32.xlu0 %v867, 64
  %v870 = vpop.permute.xlu0 %869
  %v872 = vadd.f32 %v855, %v870
  %v873 = vtanh.pop %v872
  %v874 = vsub.f32 1.0, %v862
  %876 = vrot.lane.b32.xlu0 %v873, 96
  %v877 = vpop.permute.xlu0 %876
  %v879 = vmul.f32 %v874, %v877
  %880 = vrot.lane.b32.xlu0 %v753, 32
  %v881 = vpop.permute.xlu0 %880
  %v883 = vmul.f32 %v862, %v881
  %v884 = vadd.f32 %v879, %v883
  %886 = vrot.lane.b32.xlu0 %v884, 96
  %v887 = vpop.permute.xlu0 %886
  %889 = vst.msk [vmem:[#allocation2] sm:$0xf] %vm16, %v887
  %s890 = scalar_lea.vmem [#allocation3], 10
  %891 = vst.msk [vmem:[%s890] sm:$0x3] %vm178, %v887
  %s892 = scalar_lea.vmem [#allocation4], 4
  %893 = vst.msk [vmem:[%s892 - $0x2] sm:$0xc] %vm181, %v887
  %v894 = vld [vmem:[#allocation2] sm:$0xf]
  %v896 = vsel %vm39, %v894, 0
  %898 = vmatprep.subr.mxu0 %v19
  %899 = vmatpush1.msra.mxu0 %v18
  %900 = vmatprep.subr.mxu0 %v21
  %901 = vmatpush1.msra.mxu0 %v20
  %902 = vmatprep.subr.mxu0 %v23
  %903 = vmatpush1.msra.mxu0 %v22
  %904 = vmatprep.subr.mxu0 %v25
  %905 = vmatpush1.msra.mxu0 %v24
  %906 = vmatprep.subr.mxu0 0.0
  %907 = vmatpush1.msra.mxu0 0.0
  %908 = vmatprep.subr.mxu0 0.0
  %909 = vmatpush1.msra.mxu0 0.0
  %910 = vmatprep.subr.mxu0 0.0
  %911 = vmatpush1.msra.mxu0 0.0
  %912 = vmatprep.subr.mxu0 0.0
  %913 = vmatpush1.msra.mxu0 0.0
  %914 = vmatprep.subr.mxu0 0.0
  %915 = vmatpush1.msra.mxu0 0.0
  %916 = vmatprep.subr.mxu0 0.0
  %917 = vmatpush1.msra.mxu0 0.0
  %918 = vmatprep.subr.mxu0 0.0
  %919 = vmatpush1.msra.mxu0 0.0
  %920 = vmatprep.subr.mxu0 0.0
  %921 = vmatpush1.msra.mxu0 0.0
  %922 = vmatprep.subr.mxu0 0.0
  %923 = vmatpush1.msra.mxu0 0.0
  %924 = vmatprep.subr.mxu0 0.0
  %925 = vmatpush1.msra.mxu0 0.0
  %926 = vmatprep.subr.mxu0 0.0
  %927 = vmatpush1.msra.mxu0 0.0
  %928 = vmatprep.subr.mxu0 0.0
  %929 = vmatpush1.msra.mxu0 0.0
  %930 = vmatprep.subr.mxu0 0.0
  %931 = vmatpush1.msra.mxu0 0.0
  %932 = vmatprep.subr.mxu0 0.0
  %933 = vmatpush1.msra.mxu0 0.0
  %934 = vmatprep.subr.mxu0 0.0
  %935 = vmatpush1.msra.mxu0 0.0
  %936 = vmatprep.subr.mxu0 0.0
  %937 = vmatpush1.msra.mxu0 0.0
  %938 = vmatprep.subr.mxu0 0.0
  %939 = vmatpush1.msra.mxu0 0.0
  %940 = vmatprep.subr.mxu0 0.0
  %941 = vmatpush1.msra.mxu0 0.0
  %942 = vmatprep.subr.mxu0 0.0
  %943 = vmatpush1.msra.mxu0 0.0
  %944 = vmatprep.subr.mxu0 0.0
  %945 = vmatpush1.msra.mxu0 0.0
  %946 = vmatprep.subr.mxu0 0.0
  %947 = vmatpush1.msra.mxu0 0.0
  %948 = vmatprep.subr.mxu0 0.0
  %949 = vmatpush1.msra.mxu0 0.0
  %950 = vmatprep.subr.mxu0 0.0
  %951 = vmatpush1.msra.mxu0 0.0
  %952 = vmatprep.subr.mxu0 0.0
  %953 = vmatpush1.msra.mxu0 0.0
  %954 = vmatprep.subr.mxu0 0.0
  %955 = vmatpush1.msra.mxu0 0.0
  %956 = vmatprep.subr.mxu0 0.0
  %957 = vmatpush1.msra.mxu0 0.0
  %958 = vmatprep.subr.mxu0 0.0
  %959 = vmatpush1.msra.mxu0 0.0
  %960 = vmatprep.subr.mxu0 0.0
  %961 = vmatpush1.msra.mxu0 0.0
  %962 = vmatprep.mubr.f32.mxu0 0.0
  %963 = vmatmul.mubr.f32.gmra.mrb[0].mxu0 %v896
  %v964 = vpop.f32.mrb[0].mxu0
  %v965 = vadd.f32 %v32, %v964
  %v966 = vpop.f32.mrb[0].mxu0
  %v967 = vadd.f32 %v36, %v966
  %968 = vdwg.mxu0
  %971 = vrot.lane.b32.xlu0 %v965, 32
  %v972 = vpop.permute.xlu0 %971
  %973 = vrot.lane.b32.xlu0 %v967, 32
  %v974 = vpop.permute.xlu0 %973
  %v975 = vsel %vm39, %v972, %v974
  %v977 = vsel %vm122, %v965, %v975
  %v978 = vld [vmem:[%s269] sm:$0xf]
  %v979 = vld [vmem:[%s267] sm:$0xf]
  %v981 = vcombine.low %v979, %v979
  %v983 = vunpack.c.l.s4 1983009808
  %v984 = vunpack.c.0.s8 %v983
  %v985 = vlaneseq
  %v986 = vshrl.u32 %v985, 7
  %v987 = vsub.s32 %v984, %v986
  %v988 = vrot.slane %v981, %v987
  %v989 = vcombine.high %v988, %v988
  %990 = vrot.lane.b32.xlu0 %v988, 32
  %v991 = vpop.permute.xlu0 %990
  %992 = vrot.lane.b32.xlu0 %v989, 32
  %v993 = vpop.permute.xlu0 %992
  %v994 = vsel %vm39, %v991, %v993
  %v996 = vsel %vm122, %v978, %v994
  %v997 = vadd.f32 %v996, %v977
  %v998 = vxor.u32 %v997, 2147483648
  %v999 = vmul.f32 %v998, 1.442695
  %v1000 = vpow.pop %v999
  %v1001 = vadd.f32 %v1000, 1.0
  %v1002 = vrcp.pop %v1001
  %v1003 = vmul.f32 1.0, %v1002
  %1005 = vrot.lane.b32.xlu0 %v977, 64
  %v1006 = vpop.permute.xlu0 %1005
  %v1008 = vmul.f32 %v1003, %v1006
  %1010 = vrot.lane.b32.xlu0 %v1008, 64
  %v1011 = vpop.permute.xlu0 %1010
  %v1013 = vadd.f32 %v996, %v1011
  %v1014 = vtanh.pop %v1013
  %v1015 = vsub.f32 1.0, %v1003
  %1017 = vrot.lane.b32.xlu0 %v1014, 96
  %v1018 = vpop.permute.xlu0 %1017
  %v1020 = vmul.f32 %v1015, %v1018
  %1021 = vrot.lane.b32.xlu0 %v894, 32
  %v1022 = vpop.permute.xlu0 %1021
  %v1024 = vmul.f32 %v1003, %v1022
  %v1025 = vadd.f32 %v1020, %v1024
  %1027 = vrot.lane.b32.xlu0 %v1025, 96
  %v1028 = vpop.permute.xlu0 %1027
  %1030 = vst.msk [vmem:[#allocation2] sm:$0xf] %vm16, %v1028
  %s1031 = scalar_lea.vmem [#allocation3], 12
  %1032 = vst.msk [vmem:[%s1031] sm:$0x3] %vm178, %v1028
  %s1033 = scalar_lea.vmem [#allocation4], 2
  %1034 = vst.msk [vmem:[%s1033 - $0x2] sm:$0xc] %vm181, %v1028
  %v1035 = vld [vmem:[#allocation2] sm:$0xf]
  %v1037 = vsel %vm39, %v1035, 0
  %1039 = vmatprep.subr.mxu0 %v19
  %1040 = vmatpush1.msra.mxu0 %v18
  %1041 = vmatprep.subr.mxu0 %v21
  %1042 = vmatpush1.msra.mxu0 %v20
  %1043 = vmatprep.subr.mxu0 %v23
  %1044 = vmatpush1.msra.mxu0 %v22
  %1045 = vmatprep.subr.mxu0 %v25
  %1046 = vmatpush1.msra.mxu0 %v24
  %1047 = vmatprep.subr.mxu0 0.0
  %1048 = vmatpush1.msra.mxu0 0.0
  %1049 = vmatprep.subr.mxu0 0.0
  %1050 = vmatpush1.msra.mxu0 0.0
  %1051 = vmatprep.subr.mxu0 0.0
  %1052 = vmatpush1.msra.mxu0 0.0
  %1053 = vmatprep.subr.mxu0 0.0
  %1054 = vmatpush1.msra.mxu0 0.0
  %1055 = vmatprep.subr.mxu0 0.0
  %1056 = vmatpush1.msra.mxu0 0.0
  %1057 = vmatprep.subr.mxu0 0.0
  %1058 = vmatpush1.msra.mxu0 0.0
  %1059 = vmatprep.subr.mxu0 0.0
  %1060 = vmatpush1.msra.mxu0 0.0
  %1061 = vmatprep.subr.mxu0 0.0
  %1062 = vmatpush1.msra.mxu0 0.0
  %1063 = vmatprep.subr.mxu0 0.0
  %1064 = vmatpush1.msra.mxu0 0.0
  %1065 = vmatprep.subr.mxu0 0.0
  %1066 = vmatpush1.msra.mxu0 0.0
  %1067 = vmatprep.subr.mxu0 0.0
  %1068 = vmatpush1.msra.mxu0 0.0
  %1069 = vmatprep.subr.mxu0 0.0
  %1070 = vmatpush1.msra.mxu0 0.0
  %1071 = vmatprep.subr.mxu0 0.0
  %1072 = vmatpush1.msra.mxu0 0.0
  %1073 = vmatprep.subr.mxu0 0.0
  %1074 = vmatpush1.msra.mxu0 0.0
  %1075 = vmatprep.subr.mxu0 0.0
  %1076 = vmatpush1.msra.mxu0 0.0
  %1077 = vmatprep.subr.mxu0 0.0
  %1078 = vmatpush1.msra.mxu0 0.0
  %1079 = vmatprep.subr.mxu0 0.0
  %1080 = vmatpush1.msra.mxu0 0.0
  %1081 = vmatprep.subr.mxu0 0.0
  %1082 = vmatpush1.msra.mxu0 0.0
  %1083 = vmatprep.subr.mxu0 0.0
  %1084 = vmatpush1.msra.mxu0 0.0
  %1085 = vmatprep.subr.mxu0 0.0
  %1086 = vmatpush1.msra.mxu0 0.0
  %1087 = vmatprep.subr.mxu0 0.0
  %1088 = vmatpush1.msra.mxu0 0.0
  %1089 = vmatprep.subr.mxu0 0.0
  %1090 = vmatpush1.msra.mxu0 0.0
  %1091 = vmatprep.subr.mxu0 0.0
  %1092 = vmatpush1.msra.mxu0 0.0
  %1093 = vmatprep.subr.mxu0 0.0
  %1094 = vmatpush1.msra.mxu0 0.0
  %1095 = vmatprep.subr.mxu0 0.0
  %1096 = vmatpush1.msra.mxu0 0.0
  %1097 = vmatprep.subr.mxu0 0.0
  %1098 = vmatpush1.msra.mxu0 0.0
  %1099 = vmatprep.subr.mxu0 0.0
  %1100 = vmatpush1.msra.mxu0 0.0
  %1101 = vmatprep.subr.mxu0 0.0
  %1102 = vmatpush1.msra.mxu0 0.0
  %1103 = vmatprep.mubr.f32.mxu0 0.0
  %1104 = vmatmul.mubr.f32.gmra.mrb[0].mxu0 %v1037
  %v1105 = vpop.f32.mrb[0].mxu0
  %v1106 = vadd.f32 %v32, %v1105
  %v1107 = vpop.f32.mrb[0].mxu0
  %v1108 = vadd.f32 %v36, %v1107
  %1109 = vdwg.mxu0
  %1112 = vrot.lane.b32.xlu0 %v1106, 32
  %v1113 = vpop.permute.xlu0 %1112
  %1114 = vrot.lane.b32.xlu0 %v1108, 32
  %v1115 = vpop.permute.xlu0 %1114
  %v1116 = vsel %vm39, %v1113, %v1115
  %v1118 = vsel %vm122, %v1106, %v1116
  %v1119 = vld [vmem:[%s125] sm:$0xf]
  %v1120 = vld [vmem:[%s0] sm:$0xf]
  %v1122 = vcombine.low %v1120, %v1120
  %v1124 = vunpack.c.l.s4 1983009808
  %v1125 = vunpack.c.0.s8 %v1124
  %v1126 = vlaneseq
  %v1127 = vshrl.u32 %v1126, 7
  %v1128 = vsub.s32 %v1125, %v1127
  %v1129 = vrot.slane %v1122, %v1128
  %v1130 = vcombine.high %v1129, %v1129
  %1131 = vrot.lane.b32.xlu0 %v1129, 32
  %v1132 = vpop.permute.xlu0 %1131
  %1133 = vrot.lane.b32.xlu0 %v1130, 32
  %v1134 = vpop.permute.xlu0 %1133
  %v1135 = vsel %vm39, %v1132, %v1134
  %v1137 = vsel %vm122, %v1119, %v1135
  %v1138 = vadd.f32 %v1137, %v1118
  %v1139 = vxor.u32 %v1138, 2147483648
  %v1140 = vmul.f32 %v1139, 1.442695
  %v1141 = vpow.pop %v1140
  %v1142 = vadd.f32 %v1141, 1.0
  %v1143 = vrcp.pop %v1142
  %v1144 = vmul.f32 1.0, %v1143
  %1146 = vrot.lane.b32.xlu0 %v1118, 64
  %v1147 = vpop.permute.xlu0 %1146
  %v1149 = vmul.f32 %v1144, %v1147
  %1151 = vrot.lane.b32.xlu0 %v1149, 64
  %v1152 = vpop.permute.xlu0 %1151
  %v1154 = vadd.f32 %v1137, %v1152
  %v1155 = vtanh.pop %v1154
  %v1156 = vsub.f32 1.0, %v1144
  %1158 = vrot.lane.b32.xlu0 %v1155, 96
  %v1159 = vpop.permute.xlu0 %1158
  %v1161 = vmul.f32 %v1156, %v1159
  %1162 = vrot.lane.b32.xlu0 %v1035, 32
  %v1163 = vpop.permute.xlu0 %1162
  %v1165 = vmul.f32 %v1144, %v1163
  %v1166 = vadd.f32 %v1161, %v1165
  %1168 = vrot.lane.b32.xlu0 %v1166, 96
  %v1169 = vpop.permute.xlu0 %1168
  %1171 = vst.msk [vmem:[#allocation2] sm:$0xf] %vm16, %v1169
  %s1172 = scalar_lea.vmem [#allocation3], 14
  %1173 = vst.msk [vmem:[%s1172] sm:$0x3] %vm178, %v1169
  %1174 = vst.msk [vmem:[#allocation4 - $0x2] sm:$0xc] %vm181, %v1169
  %v1175 = vld [vmem:[#allocation3] sm:$0x3]
  %v1176 = vld [vmem:[#allocation3 + $0x2] sm:$0x3]
  %v1177 = vld [vmem:[#allocation3 + $0x4] sm:$0x3]
  %v1178 = vld [vmem:[#allocation3 + $0x6] sm:$0x3]
  %v1179 = vld [vmem:[#allocation3 + $0x8] sm:$0x3]
  %v1180 = vld [vmem:[#allocation3 + $0xa] sm:$0x3]
  %v1181 = vld [vmem:[#allocation3 + $0xc] sm:$0x3]
  %v1182 = vld [vmem:[#allocation3 + $0xe] sm:$0x3]
  %v1183 = vld [vmem:[#allocation4] sm:$0x3]
  %v1184 = vld [vmem:[#allocation4 + $0x2] sm:$0x3]
  %v1185 = vld [vmem:[#allocation4 + $0x4] sm:$0x3]
  %v1186 = vld [vmem:[#allocation4 + $0x6] sm:$0x3]
  %v1187 = vld [vmem:[#allocation4 + $0x8] sm:$0x3]
  %v1188 = vld [vmem:[#allocation4 + $0xa] sm:$0x3]
  %v1189 = vld [vmem:[#allocation4 + $0xc] sm:$0x3]
  %v1190 = vld [vmem:[#allocation4 + $0xe] sm:$0x3]
  %1199 = vrot.lane.b32.xlu0 %v1183, 32
  %v1200 = vpop.permute.xlu0 %1199
  %1201 = vrot.lane.b32.xlu0 %v1184, 32
  %v1202 = vpop.permute.xlu0 %1201
  %1203 = vrot.lane.b32.xlu0 %v1185, 32
  %v1204 = vpop.permute.xlu0 %1203
  %1205 = vrot.lane.b32.xlu0 %v1186, 32
  %v1206 = vpop.permute.xlu0 %1205
  %1207 = vrot.lane.b32.xlu0 %v1187, 32
  %v1208 = vpop.permute.xlu0 %1207
  %1209 = vrot.lane.b32.xlu0 %v1188, 32
  %v1210 = vpop.permute.xlu0 %1209
  %1211 = vrot.lane.b32.xlu0 %v1189, 32
  %v1212 = vpop.permute.xlu0 %1211
  %1213 = vrot.lane.b32.xlu0 %v1190, 32
  %v1214 = vpop.permute.xlu0 %1213
  %v1223 = vsel %vm39, %v1175, %v1200
  %v1224 = vsel %vm39, %v1176, %v1202
  %v1225 = vsel %vm39, %v1177, %v1204
  %v1226 = vsel %vm39, %v1178, %v1206
  %v1227 = vsel %vm39, %v1179, %v1208
  %v1228 = vsel %vm39, %v1180, %v1210
  %v1229 = vsel %vm39, %v1181, %v1212
  %v1230 = vsel %vm39, %v1182, %v1214
  %vm1231 = vcmask 517120
  %1232 = vst.msk [vmem:[%s3] sm:$0x3] %vm1231, %v1223
  %1233 = vst.msk [vmem:[%s3 + $0x2] sm:$0x3] %vm1231, %v1224
  %1234 = vst.msk [vmem:[%s3 + $0x4] sm:$0x3] %vm1231, %v1225
  %1235 = vst.msk [vmem:[%s3 + $0x6] sm:$0x3] %vm1231, %v1226
  %1236 = vst.msk [vmem:[%s3 + $0x8] sm:$0x3] %vm1231, %v1227
  %1237 = vst.msk [vmem:[%s3 + $0xa] sm:$0x3] %vm1231, %v1228
  %1238 = vst.msk [vmem:[%s3 + $0xc] sm:$0x3] %vm1231, %v1229
  %1239 = vst.msk [vmem:[%s3 + $0xe] sm:$0x3] %vm1231, %v1230
  %v1240 = vld [vmem:[#allocation2] sm:$0xf]
  %1241 = vst.msk [vmem:[%s4] sm:$0x3] %vm178, %v1240
  %s1242 = scalar_lea.vmem %s4, 2
  %1243 = vst.msk [vmem:[%s1242 - $0x2] sm:$0xc] %vm181, %v1240
  // Predicated region
  $region14: #{encoder_forward.5} parent=0 // pred_check
    _
  $region15: #{encoder_forward.5} parent=0 // pred_check_branch
    %1245 = sbr.rel (0) target = $region17
  $region16: #{encoder_forward.5} parent=0 // pred_region
    _
  $region17: #{encoder_forward.5} parent=0 // pred_fallthru
    _
  // Predicated region
  $region18: #{encoder_forward.5} parent=0 // pred_check
    _
  $region19: #{encoder_forward.5} parent=0 // pred_check_branch
    %1247 = sbr.rel (0) target = $region21
  $region20: #{encoder_forward.5} parent=0 // pred_region
    _
  $region21: #{encoder_forward.5} parent=0 // pred_fallthru
    _
  // Predicated region
  $region22: #{encoder_forward.5} parent=0 // pred_check
    _
  $region23: #{encoder_forward.5} parent=0 // pred_check_branch
    %1249 = sbr.rel (0) target = $region25
  $region24: #{encoder_forward.5} parent=0 // pred_region
    _
  $region25: #{encoder_forward.5} parent=0 // pred_fallthru
    _
  // Predicated region
  $region26: #{encoder_forward.5} parent=0 // pred_check
    _
  $region27: #{encoder_forward.5} parent=0 // pred_check_branch
    %1251 = sbr.rel (0) target = $region29
  $region28: #{encoder_forward.5} parent=0 // pred_region
    _
  $region29: #{encoder_forward.5} parent=0 // pred_fallthru
    _

</llo_original>
